<compile_context>
chip_gen: v6e
topology: v6e:2x2x1
jax: 0.10.0
libtpu: 0.0.40
codegen_flags: <defaults>
</compile_context>

<pallas_src>
import math
from functools import partial

import jax
import jax.numpy as jnp
from jax.experimental import pallas as pl
from jax.experimental.pallas import tpu as pltpu


# --------------------------------- kernel ------------------------------------

def _relpos_mha_kernel(q_ref, k_ref, v_ref, p_ref, mask_ref,
                       wq_ref, bq_ref, wk_ref, bk_ref, wv_ref, bv_ref,
                       wo_ref, bo_ref, bu_ref, bv2_ref,
                       o_ref, k_scr, v_scr,
                       *, n_head, d_k, t1, t2, tq, w_pad):
    f32 = jnp.float32
    bf16 = jnp.bfloat16

    # --- K/V projections: batch-level work, done once per batch element ------
    # (q-tile axis is "arbitrary" => sequential; VMEM scratch persists across it)
    @pl.when(pl.program_id(1) == 0)
    def _():
        k = jnp.dot(k_ref[...], wk_ref[...], preferred_element_type=f32) + bk_ref[...]
        v = jnp.dot(v_ref[...], wv_ref[...], preferred_element_type=f32) + bv_ref[...]
        k_scr[...] = k.astype(bf16)
        v_scr[...] = v.astype(bf16)

    # --- Q projection for this (batch, q-tile); 1/sqrt(d_k) folded host-side --
    q = jnp.dot(q_ref[...], wq_ref[...], preferred_element_type=f32) + bq_ref[...]
    qu = (q + bu_ref[...]).astype(bf16)       # (tq, F)   bf16, cast once
    qv = (q + bv2_ref[...]).astype(bf16)      # (tq, F)
    kb = k_scr[...]                           # (t2, F)   bf16
    vb = v_scr[...]                           # (t2, F)   bf16
    pb = p_ref[...]                           # (w_pad, F) bf16 (zero-padded rows)

    # --- masking terms, hoisted out of the head loop --------------------------
    keep = mask_ref[...]                      # (1, t2) f32 in {0., 1.}
    neg_bias = (keep - 1.0) * 1e30            # 0 keep / -1e30 masked (masked_fill)

    # rel_shift: out[i, j] = bd[i, j + (t1-1) - t_glob], t_glob = qt*tq + i.
    # Implemented as ONE strided XLU rotate per head (amount = base + row idx).
    qt = pl.program_id(1)
    base_shift = (qt * tq + (w_pad - (t1 - 1))) % w_pad   # non-negative

    nt = (((1,), (1,)), ((), ()))             # contract last dims of both (A @ B^T)

    acc = jnp.zeros(o_ref.shape, f32)         # (tq, F) output-projection accumulator
    # TODO(synk): fuse ac/bd per head into one K=2*d_k dot for v6e/v7x MXU fill.
    for h in range(n_head):
        sl = slice(h * d_k, (h + 1) * d_k)
        ac = jax.lax.dot_general(qu[:, sl], kb[:, sl], nt, preferred_element_type=f32)
        bd = jax.lax.dot_general(qv[:, sl], pb[:, sl], nt, preferred_element_type=f32)
        bd = pltpu.roll(bd, base_shift, axis=1, stride=1, stride_axis=0)
        scores = ac + bd[:, :t2] + neg_bias   # (tq, t2)

        m = jnp.max(scores, axis=-1, keepdims=True)
        e = jnp.exp(scores - m)
        denom = jnp.sum(e, axis=-1, keepdims=True)
        attn = (e * pl.reciprocal(denom, approx=True)) * keep
        # TODO(synk): attention dropout omitted (identity / inference); zero_triu=False.

        ctx = jnp.dot(attn.astype(bf16), vb[:, sl], preferred_element_type=f32)
        # Accumulate the output projection per head (no lane-concat of d_k pieces).
        acc = acc + jnp.dot(ctx.astype(bf16), wo_ref[h * d_k:(h + 1) * d_k, :],
                            preferred_element_type=f32)

    o_ref[...] = (acc + bo_ref[...]).astype(o_ref.dtype)


# -------------------------------- wrapper -------------------------------------

def rel_pos_mha(query, key, value, pos_emb, mask, params, n_head,
                *, tq=None, out_dtype=jnp.float32):
    B, T1, F = query.shape
    T2 = key.shape[1]
    P = pos_emb.shape[1]
    assert T1 == T2, "rel_shift add requires time1 == time2"
    assert P == 2 * T1 - 1
    # TODO(synk): espnet also allows a (B, T1, T2) mask; only (B, 1, T2) handled.
    assert mask.shape == (B, 1, T2), "kernel supports the (B, 1, time2) mask layout"
    d_k = F // n_head
    scale = 1.0 / math.sqrt(d_k)

    if tq is None:
        tq = min(T1, 128)
    assert T1 % tq == 0 and (tq == T1 or tq % 8 == 0)
    n_qt = T1 // tq

    bf = lambda a: a.astype(jnp.bfloat16)
    row = lambda a: a.reshape(1, F).astype(jnp.float32)

    # Fold 1/sqrt(d_k) into the q path (weight, bias, positional biases).
    wq = bf(params["wq_t"] * scale)
    bq = row(params["bq"] * scale)
    wk = bf(params["wk_t"]); bk = row(params["bk"])
    wv = bf(params["wv_t"]); bv = row(params["bv"])
    wo = bf(params["wo_t"]); bo = row(params["bo"])
    bu = row(params["pos_bias_u"] * scale)
    bvb = row(params["pos_bias_v"] * scale)

    # Batch-invariant positional projection, precomputed once in XLA and
    # zero-padded to a 128-multiple row count (lane-aligned bd, valid for the
    # rel_shift roll since padded columns never land in the kept [0, T1) range).
    W = ((P + 127) // 128) * 128
    p = pos_emb[0].astype(jnp.float32) @ params["wp_t"].astype(jnp.float32)
    p_pad = jnp.zeros((W, F), jnp.float32).at[:P].set(p).astype(jnp.bfloat16)

    # Mask as float keep-probabilities (1 keep / 0 masked).
    keep = (mask != 0).astype(jnp.float32)

    kernel = partial(_relpos_mha_kernel, n_head=n_head, d_k=d_k,
                     t1=T1, t2=T2, tq=tq, w_pad=W)

    mat_spec = pl.BlockSpec((F, F), lambda b, q: (0, 0))
    row_spec = pl.BlockSpec((1, F), lambda b, q: (0, 0))

    return pl.pallas_call(
        kernel,
        out_shape=jax.ShapeDtypeStruct((B, T1, F), out_dtype),
        grid=(B, n_qt),
        in_specs=[
            pl.BlockSpec((None, tq, F), lambda b, q: (b, q, 0)),    # query tile
            pl.BlockSpec((None, T2, F), lambda b, q: (b, 0, 0)),    # key (full)
            pl.BlockSpec((None, T2, F), lambda b, q: (b, 0, 0)),    # value (full)
            pl.BlockSpec((W, F), lambda b, q: (0, 0)),              # p (padded, bf16)
            pl.BlockSpec((None, 1, T2), lambda b, q: (b, 0, 0)),    # keep mask (f32)
            mat_spec, row_spec,      # wq, bq (scale folded)
            mat_spec, row_spec,      # wk, bk
            mat_spec, row_spec,      # wv, bv
            mat_spec, row_spec,      # wo, bo
            row_spec, row_spec,      # pos_bias_u, pos_bias_v (scale folded)
        ],
        out_specs=pl.BlockSpec((None, tq, F), lambda b, q: (b, q, 0)),
        scratch_shapes=[pltpu.VMEM((T2, F), jnp.bfloat16),          # K projected
                        pltpu.VMEM((T2, F), jnp.bfloat16)],         # V projected
        compiler_params=pltpu.CompilerParams(
            dimension_semantics=("parallel", "arbitrary"),
            vmem_limit_bytes=64 * 1024 * 1024),
    )(bf(query), bf(key), bf(value), p_pad, keep,
      wq, bq, wk, bk, wv, bv, wo, bo, bu, bvb)


# ---------------------- pure-JAX reference (for checking) ---------------------

def _rel_shift_ref(x):
    b, h, t, p = x.shape
    zero_pad = jnp.zeros((b, h, t, 1), x.dtype)
    x_padded = jnp.concatenate([zero_pad, x], axis=-1)
    x_padded = x_padded.reshape(b, h, p + 1, t)
    return x_padded[:, :, 1:].reshape(b, h, t, p)[:, :, :, : p // 2 + 1]


def reference(query, key, value, pos_emb, mask, params, n_head):
    B, T1, F = query.shape
    T2 = key.shape[1]
    h = n_head
    d_k = F // h
    q = query @ params["wq_t"] + params["bq"]
    k = key @ params["wk_t"] + params["bk"]
    v = value @ params["wv_t"] + params["bv"]
    p = pos_emb @ params["wp_t"]
    q = q.reshape(B, T1, h, d_k)
    k = k.reshape(B, T2, h, d_k).transpose(0, 2, 1, 3)
    v = v.reshape(B, T2, h, d_k).transpose(0, 2, 1, 3)
    p = p.reshape(1, -1, h, d_k).transpose(0, 2, 1, 3)
    q_u = (q + params["pos_bias_u"]).transpose(0, 2, 1, 3)
    q_v = (q + params["pos_bias_v"]).transpose(0, 2, 1, 3)
    ac = q_u @ jnp.swapaxes(k, -2, -1)
    bd = q_v @ jnp.swapaxes(p, -2, -1)
    bd = _rel_shift_ref(bd)
    scores = (ac + bd) / math.sqrt(d_k)
    m = mask[:, None, :, :] == 0
    scores = jnp.where(m, jnp.finfo(jnp.float32).min, scores)
    attn = jnp.where(m, 0.0, jax.nn.softmax(scores, axis=-1))
    x = attn @ v
    x = x.transpose(0, 2, 1, 3).reshape(B, T1, F)
    return x @ params["wo_t"] + params["bo"]


# ----------------------------------- main --------------------------------------

if __name__ == "__main__":
    B, T, F, H = 2, 16, 32, 4
    P = 2 * T - 1

    key0 = jax.random.PRNGKey(0)
    ks = jax.random.split(key0, 16)
    bound = 1.0 / math.sqrt(F)
    u = lambda k, shape: jax.random.uniform(k, shape, jnp.float32, -bound, bound)

    # nn.Linear weights stored pre-transposed for x @ W^T.
    params = {
        "wq_t": u(ks[0], (F, F)), "bq": u(ks[1], (F,)),
        "wk_t": u(ks[2], (F, F)), "bk": u(ks[3], (F,)),
        "wv_t": u(ks[4], (F, F)), "bv": u(ks[5], (F,)),
        "wp_t": u(ks[6], (F, F)),                       # linear_pos (no bias)
        "wo_t": u(ks[7], (F, F)), "bo": u(ks[8], (F,)),
        "pos_bias_u": u(ks[9], (H, F // H)),
        "pos_bias_v": u(ks[10], (H, F // H)),
    }

    query = jax.random.normal(ks[11], (B, T, F), jnp.float32)
    key_in = jax.random.normal(ks[12], (B, T, F), jnp.float32)
    value_in = jax.random.normal(ks[13], (B, T, F), jnp.float32)
    pos_emb = jax.random.normal(ks[14], (1, P, F), jnp.float32)

    # Padding mask (1 = keep, 0 = masked); no fully-masked row.
    lens = jnp.array([16, 11], jnp.int32)
    mask = (jnp.arange(T)[None, None, :] < lens[:, None, None]).astype(jnp.int32)

    # tq=8 -> grid=(2, 2): exercises the query-tiling + tile-dependent rel_shift.
    out = rel_pos_mha(query, key_in, value_in, pos_emb, mask, params, H, tq=8)
    out = jax.block_until_ready(out)

    ref = reference(query, key_in, value_in, pos_emb, mask, params, H)
    assert out.shape == (B, T, F)
    max_err = float(jnp.max(jnp.abs(out - ref)))
    # bf16 MXU operands vs. f32 reference -> loose-but-meaningful tolerance.
    assert max_err < 6e-2, f"max abs error too large: {max_err}"
    print("KERNEL_OK")
</pallas_src>

<mosaic_0001>
module attributes {stable_mosaic.version = 11 : i64} {
  func.func @_relpos_mha_kernel(%arg0: i32, %arg1: i32, %arg2: memref<1x8x32xbf16, #tpu.memory_space<vmem>>, %arg3: memref<1x16x32xbf16, #tpu.memory_space<vmem>>, %arg4: memref<1x16x32xbf16, #tpu.memory_space<vmem>>, %arg5: memref<128x32xbf16, #tpu.memory_space<vmem>>, %arg6: memref<1x1x16xf32, #tpu.memory_space<vmem>>, %arg7: memref<32x32xbf16, #tpu.memory_space<vmem>>, %arg8: memref<1x32xf32, #tpu.memory_space<vmem>>, %arg9: memref<32x32xbf16, #tpu.memory_space<vmem>>, %arg10: memref<1x32xf32, #tpu.memory_space<vmem>>, %arg11: memref<32x32xbf16, #tpu.memory_space<vmem>>, %arg12: memref<1x32xf32, #tpu.memory_space<vmem>>, %arg13: memref<32x32xbf16, #tpu.memory_space<vmem>>, %arg14: memref<1x32xf32, #tpu.memory_space<vmem>>, %arg15: memref<1x32xf32, #tpu.memory_space<vmem>>, %arg16: memref<1x32xf32, #tpu.memory_space<vmem>>, %arg17: memref<1x8x32xf32, #tpu.memory_space<vmem>>, %arg18: memref<16x32xbf16, #tpu.memory_space<vmem>>, %arg19: memref<16x32xbf16, #tpu.memory_space<vmem>>) attributes {dimension_semantics = [#tpu.dimension_semantics<parallel>, #tpu.dimension_semantics<arbitrary>], iteration_bounds = array<i64: 2, 2>, scalar_prefetch = 0 : i64, scratch_operands = 2 : i64, tpu.core_type = #tpu.core_type<tc>, window_params = [{transform_indices = @transform_0, window_bounds = array<i64: 1, 8, 32>}, {transform_indices = @transform_1, window_bounds = array<i64: 1, 16, 32>}, {transform_indices = @transform_2, window_bounds = array<i64: 1, 16, 32>}, {pipeline_mode = #tpu.pipeline_mode<synchronous>, transform_indices = @transform_3, window_bounds = array<i64: 128, 32>}, {transform_indices = @transform_4, window_bounds = array<i64: 1, 1, 16>}, {pipeline_mode = #tpu.pipeline_mode<synchronous>, transform_indices = @transform_5, window_bounds = array<i64: 32, 32>}, {pipeline_mode = #tpu.pipeline_mode<synchronous>, transform_indices = @transform_6, window_bounds = array<i64: 1, 32>}, {pipeline_mode = #tpu.pipeline_mode<synchronous>, transform_indices = @transform_7, window_bounds = array<i64: 32, 32>}, {pipeline_mode = #tpu.pipeline_mode<synchronous>, transform_indices = @transform_8, window_bounds = array<i64: 1, 32>}, {pipeline_mode = #tpu.pipeline_mode<synchronous>, transform_indices = @transform_9, window_bounds = array<i64: 32, 32>}, {pipeline_mode = #tpu.pipeline_mode<synchronous>, transform_indices = @transform_10, window_bounds = array<i64: 1, 32>}, {pipeline_mode = #tpu.pipeline_mode<synchronous>, transform_indices = @transform_11, window_bounds = array<i64: 32, 32>}, {pipeline_mode = #tpu.pipeline_mode<synchronous>, transform_indices = @transform_12, window_bounds = array<i64: 1, 32>}, {pipeline_mode = #tpu.pipeline_mode<synchronous>, transform_indices = @transform_13, window_bounds = array<i64: 1, 32>}, {pipeline_mode = #tpu.pipeline_mode<synchronous>, transform_indices = @transform_14, window_bounds = array<i64: 1, 32>}, {transform_indices = @transform_15, window_bounds = array<i64: 1, 8, 32>}]} {
    %c0_i32 = arith.constant 0 : i32
    %0 = arith.cmpi eq, %arg1, %c0_i32 : i32
    %1 = arith.extui %0 : i1 to i32
    %c0_i32_0 = arith.constant 0 : i32
    %2 = arith.cmpi ne, %1, %c0_i32_0 : i32
    scf.if %2 {
      %c0_61 = arith.constant 0 : index
      %c0_62 = arith.constant 0 : index
      %c0_63 = arith.constant 0 : index
      %166 = vector.load %arg3[%c0_61, %c0_62, %c0_63] : memref<1x16x32xbf16, #tpu.memory_space<vmem>>, vector<1x16x32xbf16>
      %167 = vector.shape_cast %166 : vector<1x16x32xbf16> to vector<16x32xbf16>
      %c0_64 = arith.constant 0 : index
      %c0_65 = arith.constant 0 : index
      %168 = vector.load %arg9[%c0_64, %c0_65] : memref<32x32xbf16, #tpu.memory_space<vmem>>, vector<32x32xbf16>
      %cst_66 = arith.constant dense<0.000000e+00> : vector<16x32xf32>
      %169 = tpu.matmul %167, %168, %cst_66 {dimension_numbers = #tpu.dot_dimension_numbers<[1], [0], [0], [1], [0, 0, 1, 1], [], []>} : vector<16x32xbf16>, vector<32x32xbf16>, vector<16x32xf32> -> vector<16x32xf32>
      %c0_67 = arith.constant 0 : index
      %c0_68 = arith.constant 0 : index
      %170 = vector.load %arg10[%c0_67, %c0_68] : memref<1x32xf32, #tpu.memory_space<vmem>>, vector<1x32xf32>
      %171 = vector.broadcast %170 : vector<1x32xf32> to vector<16x32xf32>
      %172 = arith.addf %169, %171 : vector<16x32xf32>
      %c0_69 = arith.constant 0 : index
      %c0_70 = arith.constant 0 : index
      %c0_71 = arith.constant 0 : index
      %173 = vector.load %arg4[%c0_69, %c0_70, %c0_71] : memref<1x16x32xbf16, #tpu.memory_space<vmem>>, vector<1x16x32xbf16>
      %174 = vector.shape_cast %173 : vector<1x16x32xbf16> to vector<16x32xbf16>
      %c0_72 = arith.constant 0 : index
      %c0_73 = arith.constant 0 : index
      %175 = vector.load %arg11[%c0_72, %c0_73] : memref<32x32xbf16, #tpu.memory_space<vmem>>, vector<32x32xbf16>
      %cst_74 = arith.constant dense<0.000000e+00> : vector<16x32xf32>
      %176 = tpu.matmul %174, %175, %cst_74 {dimension_numbers = #tpu.dot_dimension_numbers<[1], [0], [0], [1], [0, 0, 1, 1], [], []>} : vector<16x32xbf16>, vector<32x32xbf16>, vector<16x32xf32> -> vector<16x32xf32>
      %c0_75 = arith.constant 0 : index
      %c0_76 = arith.constant 0 : index
      %177 = vector.load %arg12[%c0_75, %c0_76] : memref<1x32xf32, #tpu.memory_space<vmem>>, vector<1x32xf32>
      %178 = vector.broadcast %177 : vector<1x32xf32> to vector<16x32xf32>
      %179 = arith.addf %176, %178 : vector<16x32xf32>
      %180 = arith.truncf %172 : vector<16x32xf32> to vector<16x32xbf16>
      %c0_77 = arith.constant 0 : index
      %c0_78 = arith.constant 0 : index
      %181 = vector.load %arg18[%c0_77, %c0_78] : memref<16x32xbf16, #tpu.memory_space<vmem>>, vector<16x32xbf16>
      tpu.vector_store %arg18[%c0_77, %c0_78], %180 {strides = array<i32>} : memref<16x32xbf16, #tpu.memory_space<vmem>>, vector<16x32xbf16>,
      %182 = arith.truncf %179 : vector<16x32xf32> to vector<16x32xbf16>
      %c0_79 = arith.constant 0 : index
      %c0_80 = arith.constant 0 : index
      %183 = vector.load %arg19[%c0_79, %c0_80] : memref<16x32xbf16, #tpu.memory_space<vmem>>, vector<16x32xbf16>
      tpu.vector_store %arg19[%c0_79, %c0_80], %182 {strides = array<i32>} : memref<16x32xbf16, #tpu.memory_space<vmem>>, vector<16x32xbf16>,
    } else {
    }
    %c0 = arith.constant 0 : index
    %c0_1 = arith.constant 0 : index
    %c0_2 = arith.constant 0 : index
    %3 = vector.load %arg2[%c0, %c0_1, %c0_2] : memref<1x8x32xbf16, #tpu.memory_space<vmem>>, vector<1x8x32xbf16>
    %4 = vector.shape_cast %3 : vector<1x8x32xbf16> to vector<8x32xbf16>
    %c0_3 = arith.constant 0 : index
    %c0_4 = arith.constant 0 : index
    %5 = vector.load %arg7[%c0_3, %c0_4] : memref<32x32xbf16, #tpu.memory_space<vmem>>, vector<32x32xbf16>
    %cst = arith.constant dense<0.000000e+00> : vector<8x32xf32>
    %6 = tpu.matmul %4, %5, %cst {dimension_numbers = #tpu.dot_dimension_numbers<[1], [0], [0], [1], [0, 0, 1, 1], [], []>} : vector<8x32xbf16>, vector<32x32xbf16>, vector<8x32xf32> -> vector<8x32xf32>
    %c0_5 = arith.constant 0 : index
    %c0_6 = arith.constant 0 : index
    %7 = vector.load %arg8[%c0_5, %c0_6] : memref<1x32xf32, #tpu.memory_space<vmem>>, vector<1x32xf32>
    %8 = vector.broadcast %7 : vector<1x32xf32> to vector<8x32xf32>
    %9 = arith.addf %6, %8 : vector<8x32xf32>
    %c0_7 = arith.constant 0 : index
    %c0_8 = arith.constant 0 : index
    %10 = vector.load %arg15[%c0_7, %c0_8] : memref<1x32xf32, #tpu.memory_space<vmem>>, vector<1x32xf32>
    %11 = vector.broadcast %10 : vector<1x32xf32> to vector<8x32xf32>
    %12 = arith.addf %9, %11 : vector<8x32xf32>
    %13 = arith.truncf %12 : vector<8x32xf32> to vector<8x32xbf16>
    %c0_9 = arith.constant 0 : index
    %c0_10 = arith.constant 0 : index
    %14 = vector.load %arg16[%c0_9, %c0_10] : memref<1x32xf32, #tpu.memory_space<vmem>>, vector<1x32xf32>
    %15 = vector.broadcast %14 : vector<1x32xf32> to vector<8x32xf32>
    %16 = arith.addf %9, %15 : vector<8x32xf32>
    %17 = arith.truncf %16 : vector<8x32xf32> to vector<8x32xbf16>
    %c0_11 = arith.constant 0 : index
    %c0_12 = arith.constant 0 : index
    %18 = vector.load %arg18[%c0_11, %c0_12] : memref<16x32xbf16, #tpu.memory_space<vmem>>, vector<16x32xbf16>
    %c0_13 = arith.constant 0 : index
    %c0_14 = arith.constant 0 : index
    %19 = vector.load %arg19[%c0_13, %c0_14] : memref<16x32xbf16, #tpu.memory_space<vmem>>, vector<16x32xbf16>
    %c0_15 = arith.constant 0 : index
    %c0_16 = arith.constant 0 : index
    %20 = vector.load %arg5[%c0_15, %c0_16] : memref<128x32xbf16, #tpu.memory_space<vmem>>, vector<128x32xbf16>
    %c0_17 = arith.constant 0 : index
    %c0_18 = arith.constant 0 : index
    %c0_19 = arith.constant 0 : index
    %21 = vector.load %arg6[%c0_17, %c0_18, %c0_19] : memref<1x1x16xf32, #tpu.memory_space<vmem>>, vector<1x1x16xf32>
    %22 = vector.shape_cast %21 : vector<1x1x16xf32> to vector<1x16xf32>
    %cst_20 = arith.constant 1.000000e+00 : f32
    %23 = vector.broadcast %cst_20 : f32 to vector<1x16xf32>
    %24 = arith.subf %22, %23 : vector<1x16xf32>
    %cst_21 = arith.constant 1.000000e+30 : f32
    %25 = vector.broadcast %cst_21 : f32 to vector<1x16xf32>
    %26 = arith.mulf %24, %25 : vector<1x16xf32>
    %c8_i32 = arith.constant 8 : i32
    %27 = arith.muli %arg1, %c8_i32 : i32
    %c113_i32 = arith.constant 113 : i32
    %28 = arith.addi %27, %c113_i32 : i32
    %c128_i32 = arith.constant 128 : i32
    %c0_i32_22 = arith.constant 0 : i32
    %29 = arith.cmpi eq, %c128_i32, %c0_i32_22 : i32
    %c1_i32 = arith.constant 1 : i32
    %30 = arith.select %29, %c1_i32, %c128_i32 : i32
    %31 = arith.remsi %28, %30 : i32
    %c0_i32_23 = arith.constant 0 : i32
    %32 = arith.cmpi ne, %31, %c0_i32_23 : i32
    %c0_i32_24 = arith.constant 0 : i32
    %33 = arith.cmpi slt, %31, %c0_i32_24 : i32
    %c0_i32_25 = arith.constant 0 : i32
    %34 = arith.cmpi slt, %30, %c0_i32_25 : i32
    %35 = arith.xori %33, %34 : i1
    %36 = arith.andi %35, %32 : i1
    %37 = arith.addi %31, %30 : i32
    %38 = arith.select %36, %37, %31 : i32
    %cst_26 = arith.constant 0.000000e+00 : f32
    %39 = vector.broadcast %cst_26 : f32 to vector<8x32xf32>
    %40 = vector.extract_strided_slice %13 {offsets = [0, 0], sizes = [8, 8], strides = [1, 1]} : vector<8x32xbf16> to vector<8x8xbf16>
    %41 = vector.extract_strided_slice %18 {offsets = [0, 0], sizes = [16, 8], strides = [1, 1]} : vector<16x32xbf16> to vector<16x8xbf16>
    %cst_27 = arith.constant dense<0.000000e+00> : vector<8x16xf32>
    %42 = tpu.matmul %40, %41, %cst_27 {dimension_numbers = #tpu.dot_dimension_numbers<[1], [1], [0], [0], [0, 0, 1, 0], [], []>} : vector<8x8xbf16>, vector<16x8xbf16>, vector<8x16xf32> -> vector<8x16xf32>
    %43 = vector.extract_strided_slice %17 {offsets = [0, 0], sizes = [8, 8], strides = [1, 1]} : vector<8x32xbf16> to vector<8x8xbf16>
    %44 = vector.extract_strided_slice %20 {offsets = [0, 0], sizes = [128, 8], strides = [1, 1]} : vector<128x32xbf16> to vector<128x8xbf16>
    %cst_28 = arith.constant dense<0.000000e+00> : vector<8x128xf32>
    %45 = tpu.matmul %43, %44, %cst_28 {dimension_numbers = #tpu.dot_dimension_numbers<[1], [1], [0], [0], [0, 0, 1, 0], [], []>} : vector<8x8xbf16>, vector<128x8xbf16>, vector<8x128xf32> -> vector<8x128xf32>
    %46 = tpu.dynamic_rotate %45 by %38 dim 1 {stride = 1 : si32, stride_dimension = 0 : si32} : vector<8x128xf32>, i32 -> vector<8x128xf32>
    %47 = vector.extract_strided_slice %46 {offsets = [0, 0], sizes = [8, 16], strides = [1, 1]} : vector<8x128xf32> to vector<8x16xf32>
    %48 = arith.addf %42, %47 : vector<8x16xf32>
    %49 = vector.broadcast %26 : vector<1x16xf32> to vector<8x16xf32>
    %50 = arith.addf %48, %49 : vector<8x16xf32>
    %cst_29 = arith.constant dense<0xFF800000> : vector<8xf32>
    %51 = vector.multi_reduction <maximumf>, %50, %cst_29 [1] : vector<8x16xf32> to vector<8xf32>
    %52 = vector.shape_cast %51 : vector<8xf32> to vector<8x1xf32>
    %53 = vector.broadcast %52 : vector<8x1xf32> to vector<8x16xf32>
    %54 = arith.subf %50, %53 : vector<8x16xf32>
    %55 = math.exp %54 : vector<8x16xf32>
    %cst_30 = arith.constant dense<0.000000e+00> : vector<8xf32>
    %56 = vector.multi_reduction <add>, %55, %cst_30 [1] : vector<8x16xf32> to vector<8xf32>
    %57 = vector.shape_cast %56 : vector<8xf32> to vector<8x1xf32>
    %58 = tpu.reciprocal %57 {approx = true} : vector<8x1xf32> -> vector<8x1xf32>
    %59 = vector.broadcast %58 : vector<8x1xf32> to vector<8x16xf32>
    %60 = arith.mulf %55, %59 : vector<8x16xf32>
    %61 = vector.broadcast %22 : vector<1x16xf32> to vector<8x16xf32>
    %62 = arith.mulf %60, %61 : vector<8x16xf32>
    %63 = arith.truncf %62 : vector<8x16xf32> to vector<8x16xbf16>
    %64 = vector.extract_strided_slice %19 {offsets = [0, 0], sizes = [16, 8], strides = [1, 1]} : vector<16x32xbf16> to vector<16x8xbf16>
    %cst_31 = arith.constant dense<0.000000e+00> : vector<8x8xf32>
    %65 = tpu.matmul %63, %64, %cst_31 {dimension_numbers = #tpu.dot_dimension_numbers<[1], [0], [0], [1], [0, 0, 1, 1], [], []>} : vector<8x16xbf16>, vector<16x8xbf16>, vector<8x8xf32> -> vector<8x8xf32>
    %66 = arith.truncf %65 : vector<8x8xf32> to vector<8x8xbf16>
    %c0_32 = arith.constant 0 : index
    %c0_33 = arith.constant 0 : index
    %67 = vector.load %arg13[%c0_32, %c0_33] : memref<32x32xbf16, #tpu.memory_space<vmem>>, vector<8x32xbf16>
    %cst_34 = arith.constant dense<0.000000e+00> : vector<8x32xf32>
    %68 = tpu.matmul %66, %67, %cst_34 {dimension_numbers = #tpu.dot_dimension_numbers<[1], [0], [0], [1], [0, 0, 1, 1], [], []>} : vector<8x8xbf16>, vector<8x32xbf16>, vector<8x32xf32> -> vector<8x32xf32>
    %69 = arith.addf %39, %68 : vector<8x32xf32>
    %70 = vector.extract_strided_slice %13 {offsets = [0, 8], sizes = [8, 8], strides = [1, 1]} : vector<8x32xbf16> to vector<8x8xbf16>
    %71 = vector.extract_strided_slice %18 {offsets = [0, 8], sizes = [16, 8], strides = [1, 1]} : vector<16x32xbf16> to vector<16x8xbf16>
    %cst_35 = arith.constant dense<0.000000e+00> : vector<8x16xf32>
    %72 = tpu.matmul %70, %71, %cst_35 {dimension_numbers = #tpu.dot_dimension_numbers<[1], [1], [0], [0], [0, 0, 1, 0], [], []>} : vector<8x8xbf16>, vector<16x8xbf16>, vector<8x16xf32> -> vector<8x16xf32>
    %73 = vector.extract_strided_slice %17 {offsets = [0, 8], sizes = [8, 8], strides = [1, 1]} : vector<8x32xbf16> to vector<8x8xbf16>
    %74 = vector.extract_strided_slice %20 {offsets = [0, 8], sizes = [128, 8], strides = [1, 1]} : vector<128x32xbf16> to vector<128x8xbf16>
    %cst_36 = arith.constant dense<0.000000e+00> : vector<8x128xf32>
    %75 = tpu.matmul %73, %74, %cst_36 {dimension_numbers = #tpu.dot_dimension_numbers<[1], [1], [0], [0], [0, 0, 1, 0], [], []>} : vector<8x8xbf16>, vector<128x8xbf16>, vector<8x128xf32> -> vector<8x128xf32>
    %76 = tpu.dynamic_rotate %75 by %38 dim 1 {stride = 1 : si32, stride_dimension = 0 : si32} : vector<8x128xf32>, i32 -> vector<8x128xf32>
    %77 = vector.extract_strided_slice %76 {offsets = [0, 0], sizes = [8, 16], strides = [1, 1]} : vector<8x128xf32> to vector<8x16xf32>
    %78 = arith.addf %72, %77 : vector<8x16xf32>
    %79 = vector.broadcast %26 : vector<1x16xf32> to vector<8x16xf32>
    %80 = arith.addf %78, %79 : vector<8x16xf32>
    %cst_37 = arith.constant dense<0xFF800000> : vector<8xf32>
    %81 = vector.multi_reduction <maximumf>, %80, %cst_37 [1] : vector<8x16xf32> to vector<8xf32>
    %82 = vector.shape_cast %81 : vector<8xf32> to vector<8x1xf32>
    %83 = vector.broadcast %82 : vector<8x1xf32> to vector<8x16xf32>
    %84 = arith.subf %80, %83 : vector<8x16xf32>
    %85 = math.exp %84 : vector<8x16xf32>
    %cst_38 = arith.constant dense<0.000000e+00> : vector<8xf32>
    %86 = vector.multi_reduction <add>, %85, %cst_38 [1] : vector<8x16xf32> to vector<8xf32>
    %87 = vector.shape_cast %86 : vector<8xf32> to vector<8x1xf32>
    %88 = tpu.reciprocal %87 {approx = true} : vector<8x1xf32> -> vector<8x1xf32>
    %89 = vector.broadcast %88 : vector<8x1xf32> to vector<8x16xf32>
    %90 = arith.mulf %85, %89 : vector<8x16xf32>
    %91 = vector.broadcast %22 : vector<1x16xf32> to vector<8x16xf32>
    %92 = arith.mulf %90, %91 : vector<8x16xf32>
    %93 = arith.truncf %92 : vector<8x16xf32> to vector<8x16xbf16>
    %94 = vector.extract_strided_slice %19 {offsets = [0, 8], sizes = [16, 8], strides = [1, 1]} : vector<16x32xbf16> to vector<16x8xbf16>
    %cst_39 = arith.constant dense<0.000000e+00> : vector<8x8xf32>
    %95 = tpu.matmul %93, %94, %cst_39 {dimension_numbers = #tpu.dot_dimension_numbers<[1], [0], [0], [1], [0, 0, 1, 1], [], []>} : vector<8x16xbf16>, vector<16x8xbf16>, vector<8x8xf32> -> vector<8x8xf32>
    %96 = arith.truncf %95 : vector<8x8xf32> to vector<8x8xbf16>
    %c8 = arith.constant 8 : index
    %c0_40 = arith.constant 0 : index
    %97 = vector.load %arg13[%c8, %c0_40] : memref<32x32xbf16, #tpu.memory_space<vmem>>, vector<8x32xbf16>
    %cst_41 = arith.constant dense<0.000000e+00> : vector<8x32xf32>
    %98 = tpu.matmul %96, %97, %cst_41 {dimension_numbers = #tpu.dot_dimension_numbers<[1], [0], [0], [1], [0, 0, 1, 1], [], []>} : vector<8x8xbf16>, vector<8x32xbf16>, vector<8x32xf32> -> vector<8x32xf32>
    %99 = arith.addf %69, %98 : vector<8x32xf32>
    %100 = vector.extract_strided_slice %13 {offsets = [0, 16], sizes = [8, 8], strides = [1, 1]} : vector<8x32xbf16> to vector<8x8xbf16>
    %101 = vector.extract_strided_slice %18 {offsets = [0, 16], sizes = [16, 8], strides = [1, 1]} : vector<16x32xbf16> to vector<16x8xbf16>
    %cst_42 = arith.constant dense<0.000000e+00> : vector<8x16xf32>
    %102 = tpu.matmul %100, %101, %cst_42 {dimension_numbers = #tpu.dot_dimension_numbers<[1], [1], [0], [0], [0, 0, 1, 0], [], []>} : vector<8x8xbf16>, vector<16x8xbf16>, vector<8x16xf32> -> vector<8x16xf32>
    %103 = vector.extract_strided_slice %17 {offsets = [0, 16], sizes = [8, 8], strides = [1, 1]} : vector<8x32xbf16> to vector<8x8xbf16>
    %104 = vector.extract_strided_slice %20 {offsets = [0, 16], sizes = [128, 8], strides = [1, 1]} : vector<128x32xbf16> to vector<128x8xbf16>
    %cst_43 = arith.constant dense<0.000000e+00> : vector<8x128xf32>
    %105 = tpu.matmul %103, %104, %cst_43 {dimension_numbers = #tpu.dot_dimension_numbers<[1], [1], [0], [0], [0, 0, 1, 0], [], []>} : vector<8x8xbf16>, vector<128x8xbf16>, vector<8x128xf32> -> vector<8x128xf32>
    %106 = tpu.dynamic_rotate %105 by %38 dim 1 {stride = 1 : si32, stride_dimension = 0 : si32} : vector<8x128xf32>, i32 -> vector<8x128xf32>
    %107 = vector.extract_strided_slice %106 {offsets = [0, 0], sizes = [8, 16], strides = [1, 1]} : vector<8x128xf32> to vector<8x16xf32>
    %108 = arith.addf %102, %107 : vector<8x16xf32>
    %109 = vector.broadcast %26 : vector<1x16xf32> to vector<8x16xf32>
    %110 = arith.addf %108, %109 : vector<8x16xf32>
    %cst_44 = arith.constant dense<0xFF800000> : vector<8xf32>
    %111 = vector.multi_reduction <maximumf>, %110, %cst_44 [1] : vector<8x16xf32> to vector<8xf32>
    %112 = vector.shape_cast %111 : vector<8xf32> to vector<8x1xf32>
    %113 = vector.broadcast %112 : vector<8x1xf32> to vector<8x16xf32>
    %114 = arith.subf %110, %113 : vector<8x16xf32>
    %115 = math.exp %114 : vector<8x16xf32>
    %cst_45 = arith.constant dense<0.000000e+00> : vector<8xf32>
    %116 = vector.multi_reduction <add>, %115, %cst_45 [1] : vector<8x16xf32> to vector<8xf32>
    %117 = vector.shape_cast %116 : vector<8xf32> to vector<8x1xf32>
    %118 = tpu.reciprocal %117 {approx = true} : vector<8x1xf32> -> vector<8x1xf32>
    %119 = vector.broadcast %118 : vector<8x1xf32> to vector<8x16xf32>
    %120 = arith.mulf %115, %119 : vector<8x16xf32>
    %121 = vector.broadcast %22 : vector<1x16xf32> to vector<8x16xf32>
    %122 = arith.mulf %120, %121 : vector<8x16xf32>
    %123 = arith.truncf %122 : vector<8x16xf32> to vector<8x16xbf16>
    %124 = vector.extract_strided_slice %19 {offsets = [0, 16], sizes = [16, 8], strides = [1, 1]} : vector<16x32xbf16> to vector<16x8xbf16>
    %cst_46 = arith.constant dense<0.000000e+00> : vector<8x8xf32>
    %125 = tpu.matmul %123, %124, %cst_46 {dimension_numbers = #tpu.dot_dimension_numbers<[1], [0], [0], [1], [0, 0, 1, 1], [], []>} : vector<8x16xbf16>, vector<16x8xbf16>, vector<8x8xf32> -> vector<8x8xf32>
    %126 = arith.truncf %125 : vector<8x8xf32> to vector<8x8xbf16>
    %c16 = arith.constant 16 : index
    %c0_47 = arith.constant 0 : index
    %127 = vector.load %arg13[%c16, %c0_47] : memref<32x32xbf16, #tpu.memory_space<vmem>>, vector<8x32xbf16>
    %cst_48 = arith.constant dense<0.000000e+00> : vector<8x32xf32>
    %128 = tpu.matmul %126, %127, %cst_48 {dimension_numbers = #tpu.dot_dimension_numbers<[1], [0], [0], [1], [0, 0, 1, 1], [], []>} : vector<8x8xbf16>, vector<8x32xbf16>, vector<8x32xf32> -> vector<8x32xf32>
    %129 = arith.addf %99, %128 : vector<8x32xf32>
    %130 = vector.extract_strided_slice %13 {offsets = [0, 24], sizes = [8, 8], strides = [1, 1]} : vector<8x32xbf16> to vector<8x8xbf16>
    %131 = vector.extract_strided_slice %18 {offsets = [0, 24], sizes = [16, 8], strides = [1, 1]} : vector<16x32xbf16> to vector<16x8xbf16>
    %cst_49 = arith.constant dense<0.000000e+00> : vector<8x16xf32>
    %132 = tpu.matmul %130, %131, %cst_49 {dimension_numbers = #tpu.dot_dimension_numbers<[1], [1], [0], [0], [0, 0, 1, 0], [], []>} : vector<8x8xbf16>, vector<16x8xbf16>, vector<8x16xf32> -> vector<8x16xf32>
    %133 = vector.extract_strided_slice %17 {offsets = [0, 24], sizes = [8, 8], strides = [1, 1]} : vector<8x32xbf16> to vector<8x8xbf16>
    %134 = vector.extract_strided_slice %20 {offsets = [0, 24], sizes = [128, 8], strides = [1, 1]} : vector<128x32xbf16> to vector<128x8xbf16>
    %cst_50 = arith.constant dense<0.000000e+00> : vector<8x128xf32>
    %135 = tpu.matmul %133, %134, %cst_50 {dimension_numbers = #tpu.dot_dimension_numbers<[1], [1], [0], [0], [0, 0, 1, 0], [], []>} : vector<8x8xbf16>, vector<128x8xbf16>, vector<8x128xf32> -> vector<8x128xf32>
    %136 = tpu.dynamic_rotate %135 by %38 dim 1 {stride = 1 : si32, stride_dimension = 0 : si32} : vector<8x128xf32>, i32 -> vector<8x128xf32>
    %137 = vector.extract_strided_slice %136 {offsets = [0, 0], sizes = [8, 16], strides = [1, 1]} : vector<8x128xf32> to vector<8x16xf32>
    %138 = arith.addf %132, %137 : vector<8x16xf32>
    %139 = vector.broadcast %26 : vector<1x16xf32> to vector<8x16xf32>
    %140 = arith.addf %138, %139 : vector<8x16xf32>
    %cst_51 = arith.constant dense<0xFF800000> : vector<8xf32>
    %141 = vector.multi_reduction <maximumf>, %140, %cst_51 [1] : vector<8x16xf32> to vector<8xf32>
    %142 = vector.shape_cast %141 : vector<8xf32> to vector<8x1xf32>
    %143 = vector.broadcast %142 : vector<8x1xf32> to vector<8x16xf32>
    %144 = arith.subf %140, %143 : vector<8x16xf32>
    %145 = math.exp %144 : vector<8x16xf32>
    %cst_52 = arith.constant dense<0.000000e+00> : vector<8xf32>
    %146 = vector.multi_reduction <add>, %145, %cst_52 [1] : vector<8x16xf32> to vector<8xf32>
    %147 = vector.shape_cast %146 : vector<8xf32> to vector<8x1xf32>
    %148 = tpu.reciprocal %147 {approx = true} : vector<8x1xf32> -> vector<8x1xf32>
    %149 = vector.broadcast %148 : vector<8x1xf32> to vector<8x16xf32>
    %150 = arith.mulf %145, %149 : vector<8x16xf32>
    %151 = vector.broadcast %22 : vector<1x16xf32> to vector<8x16xf32>
    %152 = arith.mulf %150, %151 : vector<8x16xf32>
    %153 = arith.truncf %152 : vector<8x16xf32> to vector<8x16xbf16>
    %154 = vector.extract_strided_slice %19 {offsets = [0, 24], sizes = [16, 8], strides = [1, 1]} : vector<16x32xbf16> to vector<16x8xbf16>
    %cst_53 = arith.constant dense<0.000000e+00> : vector<8x8xf32>
    %155 = tpu.matmul %153, %154, %cst_53 {dimension_numbers = #tpu.dot_dimension_numbers<[1], [0], [0], [1], [0, 0, 1, 1], [], []>} : vector<8x16xbf16>, vector<16x8xbf16>, vector<8x8xf32> -> vector<8x8xf32>
    %156 = arith.truncf %155 : vector<8x8xf32> to vector<8x8xbf16>
    %c24 = arith.constant 24 : index
    %c0_54 = arith.constant 0 : index
    %157 = vector.load %arg13[%c24, %c0_54] : memref<32x32xbf16, #tpu.memory_space<vmem>>, vector<8x32xbf16>
    %cst_55 = arith.constant dense<0.000000e+00> : vector<8x32xf32>
    %158 = tpu.matmul %156, %157, %cst_55 {dimension_numbers = #tpu.dot_dimension_numbers<[1], [0], [0], [1], [0, 0, 1, 1], [], []>} : vector<8x8xbf16>, vector<8x32xbf16>, vector<8x32xf32> -> vector<8x32xf32>
    %159 = arith.addf %129, %158 : vector<8x32xf32>
    %c0_56 = arith.constant 0 : index
    %c0_57 = arith.constant 0 : index
    %160 = vector.load %arg14[%c0_56, %c0_57] : memref<1x32xf32, #tpu.memory_space<vmem>>, vector<1x32xf32>
    %161 = vector.broadcast %160 : vector<1x32xf32> to vector<8x32xf32>
    %162 = arith.addf %159, %161 : vector<8x32xf32>
    %c0_58 = arith.constant 0 : index
    %c0_59 = arith.constant 0 : index
    %c0_60 = arith.constant 0 : index
    %163 = vector.load %arg17[%c0_58, %c0_59, %c0_60] : memref<1x8x32xf32, #tpu.memory_space<vmem>>, vector<1x8x32xf32>
    %164 = vector.shape_cast %163 : vector<1x8x32xf32> to vector<8x32xf32>
    %165 = vector.shape_cast %162 : vector<8x32xf32> to vector<1x8x32xf32>
    tpu.vector_store %arg17[%c0_58, %c0_59, %c0_60], %165 {strides = array<i32>} : memref<1x8x32xf32, #tpu.memory_space<vmem>>, vector<1x8x32xf32>,
    return
  }
  func.func @transform_0(%arg0: i32, %arg1: i32) -> (i32, i32, i32) {
    %c0_i32 = arith.constant 0 : i32
    %c0_i32_0 = arith.constant 0 : i32
    return %arg0, %arg1, %c0_i32 : i32, i32, i32
  }
  func.func @transform_1(%arg0: i32, %arg1: i32) -> (i32, i32, i32) {
    %c0_i32 = arith.constant 0 : i32
    %c0_i32_0 = arith.constant 0 : i32
    %c0_i32_1 = arith.constant 0 : i32
    return %arg0, %c0_i32, %c0_i32_0 : i32, i32, i32
  }
  func.func @transform_2(%arg0: i32, %arg1: i32) -> (i32, i32, i32) {
    %c0_i32 = arith.constant 0 : i32
    %c0_i32_0 = arith.constant 0 : i32
    %c0_i32_1 = arith.constant 0 : i32
    return %arg0, %c0_i32, %c0_i32_0 : i32, i32, i32
  }
  func.func @transform_3(%arg0: i32, %arg1: i32) -> (i32, i32) {
    %c0_i32 = arith.constant 0 : i32
    %c0_i32_0 = arith.constant 0 : i32
    %c0_i32_1 = arith.constant 0 : i32
    return %c0_i32, %c0_i32_0 : i32, i32
  }
  func.func @transform_4(%arg0: i32, %arg1: i32) -> (i32, i32, i32) {
    %c0_i32 = arith.constant 0 : i32
    %c0_i32_0 = arith.constant 0 : i32
    %c0_i32_1 = arith.constant 0 : i32
    return %arg0, %c0_i32, %c0_i32_0 : i32, i32, i32
  }
  func.func @transform_5(%arg0: i32, %arg1: i32) -> (i32, i32) {
    %c0_i32 = arith.constant 0 : i32
    %c0_i32_0 = arith.constant 0 : i32
    %c0_i32_1 = arith.constant 0 : i32
    return %c0_i32, %c0_i32_0 : i32, i32
  }
  func.func @transform_6(%arg0: i32, %arg1: i32) -> (i32, i32) {
    %c0_i32 = arith.constant 0 : i32
    %c0_i32_0 = arith.constant 0 : i32
    %c0_i32_1 = arith.constant 0 : i32
    return %c0_i32, %c0_i32_0 : i32, i32
  }
  func.func @transform_7(%arg0: i32, %arg1: i32) -> (i32, i32) {
    %c0_i32 = arith.constant 0 : i32
    %c0_i32_0 = arith.constant 0 : i32
    %c0_i32_1 = arith.constant 0 : i32
    return %c0_i32, %c0_i32_0 : i32, i32
  }
  func.func @transform_8(%arg0: i32, %arg1: i32) -> (i32, i32) {
    %c0_i32 = arith.constant 0 : i32
    %c0_i32_0 = arith.constant 0 : i32
    %c0_i32_1 = arith.constant 0 : i32
    return %c0_i32, %c0_i32_0 : i32, i32
  }
  func.func @transform_9(%arg0: i32, %arg1: i32) -> (i32, i32) {
    %c0_i32 = arith.constant 0 : i32
    %c0_i32_0 = arith.constant 0 : i32
    %c0_i32_1 = arith.constant 0 : i32
    return %c0_i32, %c0_i32_0 : i32, i32
  }
  func.func @transform_10(%arg0: i32, %arg1: i32) -> (i32, i32) {
    %c0_i32 = arith.constant 0 : i32
    %c0_i32_0 = arith.constant 0 : i32
    %c0_i32_1 = arith.constant 0 : i32
    return %c0_i32, %c0_i32_0 : i32, i32
  }
  func.func @transform_11(%arg0: i32, %arg1: i32) -> (i32, i32) {
    %c0_i32 = arith.constant 0 : i32
    %c0_i32_0 = arith.constant 0 : i32
    %c0_i32_1 = arith.constant 0 : i32
    return %c0_i32, %c0_i32_0 : i32, i32
  }
  func.func @transform_12(%arg0: i32, %arg1: i32) -> (i32, i32) {
    %c0_i32 = arith.constant 0 : i32
    %c0_i32_0 = arith.constant 0 : i32
    %c0_i32_1 = arith.constant 0 : i32
    return %c0_i32, %c0_i32_0 : i32, i32
  }
  func.func @transform_13(%arg0: i32, %arg1: i32) -> (i32, i32) {
    %c0_i32 = arith.constant 0 : i32
    %c0_i32_0 = arith.constant 0 : i32
    %c0_i32_1 = arith.constant 0 : i32
    return %c0_i32, %c0_i32_0 : i32, i32
  }
  func.func @transform_14(%arg0: i32, %arg1: i32) -> (i32, i32) {
    %c0_i32 = arith.constant 0 : i32
    %c0_i32_0 = arith.constant 0 : i32
    %c0_i32_1 = arith.constant 0 : i32
    return %c0_i32, %c0_i32_0 : i32, i32
  }
  func.func @transform_15(%arg0: i32, %arg1: i32) -> (i32, i32, i32) {
    %c0_i32 = arith.constant 0 : i32
    %c0_i32_0 = arith.constant 0 : i32
    return %arg0, %arg1, %c0_i32 : i32, i32, i32
  }
}

</mosaic_0001>

<llo_original>
// kernel: tpu_custom_call.1
$region0: #{tpu_custom_call.1}
  #allocation0 [shape = 'u32[]', space=smem, size = 0x4, offset = 0x4, fixed_abs, tag = 'smem constant byte address 0x4 - core index']
  #allocation1 [shape = 'u32[144,128]{1,0:T(1,128)}', space=vmem, size = 0x12000, scoped, tag = 'internal scratch']
  #allocation2 [shape = 'bf16[16,32]{1,0:T(8,128)(2,1)}', space=vmem, size = 0x1000, scoped, tag = 'scratch operand']
  #allocation3 [shape = 'bf16[16,32]{1,0:T(8,128)(2,1)}', space=vmem, size = 0x1000, scoped, tag = 'scratch operand']
  %s0 = inlined_call_operand.vmem [shape: bf16[2,16,32], index: 0, kind: input, shape index: {}]
  %s1 = inlined_call_operand.vmem [shape: bf16[2,16,32], index: 1, kind: input, shape index: {}]
  %s2 = inlined_call_operand.vmem [shape: bf16[2,16,32], index: 2, kind: input, shape index: {}]
  %s3 = inlined_call_operand.vmem [shape: bf16[128,32], index: 3, kind: input, shape index: {}]
  %s4 = inlined_call_operand.hbm [shape: f32[2,1,16], index: 4, kind: input, shape index: {}]
  %s5 = inlined_call_operand.vmem [shape: bf16[32,32], index: 5, kind: input, shape index: {}]
  %s6 = inlined_call_operand.hbm [shape: f32[1,32], index: 6, kind: input, shape index: {}]
  %s7 = inlined_call_operand.vmem [shape: bf16[32,32], index: 7, kind: input, shape index: {}]
  %s8 = inlined_call_operand.hbm [shape: f32[1,32], index: 8, kind: input, shape index: {}]
  %s9 = inlined_call_operand.vmem [shape: bf16[32,32], index: 9, kind: input, shape index: {}]
  %s10 = inlined_call_operand.vmem [shape: f32[1,32], index: 10, kind: input, shape index: {}]
  %s11 = inlined_call_operand.hbm [shape: bf16[32,32], index: 11, kind: input, shape index: {}]
  %s12 = inlined_call_operand.vmem [shape: f32[1,32], index: 12, kind: input, shape index: {}]
  %s13 = inlined_call_operand.vmem [shape: f32[1,32], index: 13, kind: input, shape index: {}]
  %s14 = inlined_call_operand.vmem [shape: f32[1,32], index: 14, kind: input, shape index: {}]
  %s15 = inlined_call_operand.hbm [shape: f32[2,16,32], index: 15, kind: output, shape index: {}]
  %s16 = sld [smem:[#allocation0]]
  $region113: #{tpu_custom_call.1} parent=0
    _
  %s18 = ssub.s32 1, %s16
  %s19 = scalar_select 0, %s18, %s16
  $region1: #{tpu_custom_call.1} parent=0
    #allocation4 [shape = 'u8[1024]{0}', space=vmem, size = 0x400, scoped, tag = 'input window, operand 4']
    #allocation5 [shape = 's32[2]{0}', space=sflag, size = 0x8, scoped, tag = 'scoped memory for tpu_custom_call.1']
    #allocation6 [shape = 's32[2]{0}', space=sflag, size = 0x8, scoped, tag = 'scoped memory for tpu_custom_call.1']
    #allocation7 [shape = 'u8[512]{0}', space=vmem, size = 0x400, scoped, tag = 'input window, operand 6, single buffered']
    #allocation8 [shape = 's32[1]{0}', space=sflag, size = 0x4, scoped, tag = 'scoped memory for tpu_custom_call.1']
    #allocation9 [shape = 'u8[512]{0}', space=vmem, size = 0x400, scoped, tag = 'input window, operand 8, single buffered']
    #allocation10 [shape = 'u8[8192]{0}', space=vmem, size = 0x2000, scoped, tag = 'input window, operand 11, single buffered']
    #allocation11 [shape = 's32[1]{0}', space=sflag, size = 0x4, scoped, tag = 'scoped memory for tpu_custom_call.1']
    #allocation12 [shape = 'u8[8192]{0}', space=vmem, size = 0x2000, scoped, tag = 'output window, operand 0']
    %20 = vsyncpa [#allocation5], 0
    %s21 = scalar_lea.sflag [#allocation5], 1
    %22 = vsyncpa %s21, 0
    %23 = vsyncpa [#allocation8], 0
    %24 = vsyncpa [#allocation11], 0
    %25 = vsyncpa [#allocation6], 0
    %s26 = scalar_lea.sflag [#allocation6], 1
    %27 = vsyncpa %s26, 0
    loop: start=0, step=1, limit=6
    $region2: #{tpu_custom_call.1} parent=1 // loop_pre_header
      _
    $region3: #{tpu_custom_call.1} parent=1 // loop_header
      %s29 = sphi 0, %s33
      %p30 = scmp.ge.s32.totalorder %s29, 6
      %s36 = sphi 0, %s48
      %s37 = sphi 0, %s44
      %s38 = sphi 0, %s36
      %s39 = sphi 0, %s37
      %s40 = sphi 0, %s38
      %s41 = sphi 0, %s39
      %s53 = sphi 0, %s55
      %s56 = sphi 0, %s53
      %s57 = sphi 0, %s56
      %s73 = sphi 0, %s57
      %s79 = sphi 0, %s81
      %s82 = sphi 0, %s79
      %s83 = sphi 0, %s82
      %s99 = sphi 0, %s83
      %s105 = sphi 0, %s107
      %s108 = sphi 0, %s105
      %s109 = sphi 0, %s108
      %s125 = sphi 0, %s109
      %s129 = sphi 0, %s129
      %s131 = sphi 0, %s129
      %s132 = sphi 0, %s131
      %s146 = sphi 0, %s132
      %s152 = sphi 0, %s154
      %s155 = sphi 0, %s152
      %s156 = sphi 0, %s155
      %s172 = sphi 0, %s156
      %s176 = sphi 0, %s176
      %s178 = sphi 0, %s176
      %s179 = sphi 0, %s178
      %s193 = sphi 0, %s179
      %s197 = sphi 0, %s197
      %s199 = sphi 0, %s197
      %s200 = sphi 0, %s199
      %s214 = sphi 0, %s200
      %s218 = sphi 0, %s218
      %s220 = sphi 0, %s218
      %s221 = sphi 0, %s220
      %s235 = sphi 0, %s221
      %s239 = sphi 0, %s239
      %s241 = sphi 0, %s239
      %s242 = sphi 0, %s241
      %s256 = sphi 0, %s242
      %s260 = sphi 0, %s260
      %s262 = sphi 0, %s260
      %s263 = sphi 0, %s262
      %s277 = sphi 0, %s263
      %s281 = sphi 0, %s281
      %s283 = sphi 0, %s281
      %s284 = sphi 0, %s283
      %s298 = sphi 0, %s284
      %s302 = sphi 0, %s302
      %s304 = sphi 0, %s302
      %s305 = sphi 0, %s304
      %s319 = sphi 0, %s305
      %s323 = sphi 0, %s323
      %s325 = sphi 0, %s323
      %s326 = sphi 0, %s325
      %s340 = sphi 0, %s326
      %s344 = sphi 0, %s344
      %s346 = sphi 0, %s344
      %s347 = sphi 0, %s346
      %s361 = sphi 0, %s347
      %s365 = sphi 0, %s365
      %s367 = sphi 0, %s365
      %s368 = sphi 0, %s367
      %s382 = sphi 0, %s368
      %s390 = sphi 0, %s392
      %s393 = sphi 0, %s390
      %s394 = sphi 0, %s393
      %s410 = sphi 0, %s394
    $region4: #{tpu_custom_call.1} parent=1 // loop_header_branch
      %32 = sbr.rel (%p30) target = $region8
    $region5: #{tpu_custom_call.1} parent=1 // loop_body
      %s34 = ssub.s32 %s29, 1
      %s35 = ssub.s32 %s29, 2
      %s42 = sadd.s32 1, %s37
      %p43 = scmp.ge.s32.totalorder %s42, 2
      %s44 = scalar_select %p43, 0, %s42
      %s45 = sadd.s32 1, %s36
      %s46 = scalar_select %p43, %s45, %s36
      %p47 = scmp.ge.s32.totalorder %s46, 2
      %s48 = scalar_select %p47, 0, %s46
      %s49 = ssub.s32 %s36, %s48
      %s50 = ssub.s32 %s37, %s44
      %s51 = sor.u32 %s49, %s50
      %p52 = scmp.eq.s32.totalorder %s51, 0
      %s54 = sadd.s32 %s53, 1
      %s55 = scalar_select %p52, %s53, %s54
      %p58 = pneg %p52
      %p59 = scmp.eq.s32.totalorder %s29, 3
      %p60 = por %p58, %p59
      %p61 = scmp.ne.s32.totalorder %s53, %s56
      %p62 = scmp.eq.s32.totalorder %s29, 0
      %p63 = por %p61, %p62
      %p64 = scmp.ne.s32.totalorder %s53, %s56
      %p65 = scmp.eq.s32.totalorder %s34, 3
      %p66 = por %p64, %p65
      %p67 = scmp.ne.s32.totalorder %s56, %s57
      %p68 = scmp.eq.s32.totalorder %s34, 0
      %p69 = por %p67, %p68
      %p70 = scmp.ne.s32.totalorder %s56, %s57
      %p71 = scmp.eq.s32.totalorder %s35, 3
      %p72 = por %p70, %p71
      %p74 = scmp.ne.s32.totalorder %s57, %s73
      %p75 = scmp.eq.s32.totalorder %s35, 0
      %p76 = por %p74, %p75
      %s77 = ssub.s32 %s36, %s48
      %p78 = scmp.eq.s32.totalorder %s77, 0
      %s80 = sadd.s32 %s79, 1
      %s81 = scalar_select %p78, %s79, %s80
      %p84 = pneg %p78
      %p85 = scmp.eq.s32.totalorder %s29, 3
      %p86 = por %p84, %p85
      %p87 = scmp.ne.s32.totalorder %s79, %s82
      %p88 = scmp.eq.s32.totalorder %s29, 0
      %p89 = por %p87, %p88
      %p90 = scmp.ne.s32.totalorder %s79, %s82
      %p91 = scmp.eq.s32.totalorder %s34, 3
      %p92 = por %p90, %p91
      %p93 = scmp.ne.s32.totalorder %s82, %s83
      %p94 = scmp.eq.s32.totalorder %s34, 0
      %p95 = por %p93, %p94
      %p96 = scmp.ne.s32.totalorder %s82, %s83
      %p97 = scmp.eq.s32.totalorder %s35, 3
      %p98 = por %p96, %p97
      %p100 = scmp.ne.s32.totalorder %s83, %s99
      %p101 = scmp.eq.s32.totalorder %s35, 0
      %p102 = por %p100, %p101
      %s103 = ssub.s32 %s36, %s48
      %p104 = scmp.eq.s32.totalorder %s103, 0
      %s106 = sadd.s32 %s105, 1
      %s107 = scalar_select %p104, %s105, %s106
      %p110 = pneg %p104
      %p111 = scmp.eq.s32.totalorder %s29, 3
      %p112 = por %p110, %p111
      %p113 = scmp.ne.s32.totalorder %s105, %s108
      %p114 = scmp.eq.s32.totalorder %s29, 0
      %p115 = por %p113, %p114
      %p116 = scmp.ne.s32.totalorder %s105, %s108
      %p117 = scmp.eq.s32.totalorder %s34, 3
      %p118 = por %p116, %p117
      %p119 = scmp.ne.s32.totalorder %s108, %s109
      %p120 = scmp.eq.s32.totalorder %s34, 0
      %p121 = por %p119, %p120
      %p122 = scmp.ne.s32.totalorder %s108, %s109
      %p123 = scmp.eq.s32.totalorder %s35, 3
      %p124 = por %p122, %p123
      %p126 = scmp.ne.s32.totalorder %s109, %s125
      %p127 = scmp.eq.s32.totalorder %s35, 0
      %p128 = por %p126, %p127
      %s130 = sadd.s32 %s129, 1
      %p133 = scmp.eq.s32.totalorder %s29, 3
      %p134 = scmp.ne.s32.totalorder %s129, %s131
      %p135 = scmp.eq.s32.totalorder %s29, 0
      %p136 = por %p134, %p135
      %p137 = scmp.ne.s32.totalorder %s129, %s131
      %p138 = scmp.eq.s32.totalorder %s34, 3
      %p139 = por %p137, %p138
      %p140 = scmp.ne.s32.totalorder %s131, %s132
      %p141 = scmp.eq.s32.totalorder %s34, 0
      %p142 = por %p140, %p141
      %p143 = scmp.ne.s32.totalorder %s131, %s132
      %p144 = scmp.eq.s32.totalorder %s35, 3
      %p145 = por %p143, %p144
      %p147 = scmp.ne.s32.totalorder %s132, %s146
      %p148 = scmp.eq.s32.totalorder %s35, 0
      %p149 = por %p147, %p148
      %s150 = ssub.s32 %s36, %s48
      %p151 = scmp.eq.s32.totalorder %s150, 0
      %s153 = sadd.s32 %s152, 1
      %s154 = scalar_select %p151, %s152, %s153
      %p157 = pneg %p151
      %p158 = scmp.eq.s32.totalorder %s29, 3
      %p159 = por %p157, %p158
      %p160 = scmp.ne.s32.totalorder %s152, %s155
      %p161 = scmp.eq.s32.totalorder %s29, 0
      %p162 = por %p160, %p161
      %p163 = scmp.ne.s32.totalorder %s152, %s155
      %p164 = scmp.eq.s32.totalorder %s34, 3
      %p165 = por %p163, %p164
      %p166 = scmp.ne.s32.totalorder %s155, %s156
      %p167 = scmp.eq.s32.totalorder %s34, 0
      %p168 = por %p166, %p167
      %p169 = scmp.ne.s32.totalorder %s155, %s156
      %p170 = scmp.eq.s32.totalorder %s35, 3
      %p171 = por %p169, %p170
      %p173 = scmp.ne.s32.totalorder %s156, %s172
      %p174 = scmp.eq.s32.totalorder %s35, 0
      %p175 = por %p173, %p174
      %s177 = sadd.s32 %s176, 1
      %p180 = scmp.eq.s32.totalorder %s29, 3
      %p181 = scmp.ne.s32.totalorder %s176, %s178
      %p182 = scmp.eq.s32.totalorder %s29, 0
      %p183 = por %p181, %p182
      %p184 = scmp.ne.s32.totalorder %s176, %s178
      %p185 = scmp.eq.s32.totalorder %s34, 3
      %p186 = por %p184, %p185
      %p187 = scmp.ne.s32.totalorder %s178, %s179
      %p188 = scmp.eq.s32.totalorder %s34, 0
      %p189 = por %p187, %p188
      %p190 = scmp.ne.s32.totalorder %s178, %s179
      %p191 = scmp.eq.s32.totalorder %s35, 3
      %p192 = por %p190, %p191
      %p194 = scmp.ne.s32.totalorder %s179, %s193
      %p195 = scmp.eq.s32.totalorder %s35, 0
      %p196 = por %p194, %p195
      %s198 = sadd.s32 %s197, 1
      %p201 = scmp.eq.s32.totalorder %s29, 3
      %p202 = scmp.ne.s32.totalorder %s197, %s199
      %p203 = scmp.eq.s32.totalorder %s29, 0
      %p204 = por %p202, %p203
      %p205 = scmp.ne.s32.totalorder %s197, %s199
      %p206 = scmp.eq.s32.totalorder %s34, 3
      %p207 = por %p205, %p206
      %p208 = scmp.ne.s32.totalorder %s199, %s200
      %p209 = scmp.eq.s32.totalorder %s34, 0
      %p210 = por %p208, %p209
      %p211 = scmp.ne.s32.totalorder %s199, %s200
      %p212 = scmp.eq.s32.totalorder %s35, 3
      %p213 = por %p211, %p212
      %p215 = scmp.ne.s32.totalorder %s200, %s214
      %p216 = scmp.eq.s32.totalorder %s35, 0
      %p217 = por %p215, %p216
      %s219 = sadd.s32 %s218, 1
      %p222 = scmp.eq.s32.totalorder %s29, 3
      %p223 = scmp.ne.s32.totalorder %s218, %s220
      %p224 = scmp.eq.s32.totalorder %s29, 0
      %p225 = por %p223, %p224
      %p226 = scmp.ne.s32.totalorder %s218, %s220
      %p227 = scmp.eq.s32.totalorder %s34, 3
      %p228 = por %p226, %p227
      %p229 = scmp.ne.s32.totalorder %s220, %s221
      %p230 = scmp.eq.s32.totalorder %s34, 0
      %p231 = por %p229, %p230
      %p232 = scmp.ne.s32.totalorder %s220, %s221
      %p233 = scmp.eq.s32.totalorder %s35, 3
      %p234 = por %p232, %p233
      %p236 = scmp.ne.s32.totalorder %s221, %s235
      %p237 = scmp.eq.s32.totalorder %s35, 0
      %p238 = por %p236, %p237
      %s240 = sadd.s32 %s239, 1
      %p243 = scmp.eq.s32.totalorder %s29, 3
      %p244 = scmp.ne.s32.totalorder %s239, %s241
      %p245 = scmp.eq.s32.totalorder %s29, 0
      %p246 = por %p244, %p245
      %p247 = scmp.ne.s32.totalorder %s239, %s241
      %p248 = scmp.eq.s32.totalorder %s34, 3
      %p249 = por %p247, %p248
      %p250 = scmp.ne.s32.totalorder %s241, %s242
      %p251 = scmp.eq.s32.totalorder %s34, 0
      %p252 = por %p250, %p251
      %p253 = scmp.ne.s32.totalorder %s241, %s242
      %p254 = scmp.eq.s32.totalorder %s35, 3
      %p255 = por %p253, %p254
      %p257 = scmp.ne.s32.totalorder %s242, %s256
      %p258 = scmp.eq.s32.totalorder %s35, 0
      %p259 = por %p257, %p258
      %s261 = sadd.s32 %s260, 1
      %p264 = scmp.eq.s32.totalorder %s29, 3
      %p265 = scmp.ne.s32.totalorder %s260, %s262
      %p266 = scmp.eq.s32.totalorder %s29, 0
      %p267 = por %p265, %p266
      %p268 = scmp.ne.s32.totalorder %s260, %s262
      %p269 = scmp.eq.s32.totalorder %s34, 3
      %p270 = por %p268, %p269
      %p271 = scmp.ne.s32.totalorder %s262, %s263
      %p272 = scmp.eq.s32.totalorder %s34, 0
      %p273 = por %p271, %p272
      %p274 = scmp.ne.s32.totalorder %s262, %s263
      %p275 = scmp.eq.s32.totalorder %s35, 3
      %p276 = por %p274, %p275
      %p278 = scmp.ne.s32.totalorder %s263, %s277
      %p279 = scmp.eq.s32.totalorder %s35, 0
      %p280 = por %p278, %p279
      %s282 = sadd.s32 %s281, 1
      %p285 = scmp.eq.s32.totalorder %s29, 3
      %p286 = scmp.ne.s32.totalorder %s281, %s283
      %p287 = scmp.eq.s32.totalorder %s29, 0
      %p288 = por %p286, %p287
      %p289 = scmp.ne.s32.totalorder %s281, %s283
      %p290 = scmp.eq.s32.totalorder %s34, 3
      %p291 = por %p289, %p290
      %p292 = scmp.ne.s32.totalorder %s283, %s284
      %p293 = scmp.eq.s32.totalorder %s34, 0
      %p294 = por %p292, %p293
      %p295 = scmp.ne.s32.totalorder %s283, %s284
      %p296 = scmp.eq.s32.totalorder %s35, 3
      %p297 = por %p295, %p296
      %p299 = scmp.ne.s32.totalorder %s284, %s298
      %p300 = scmp.eq.s32.totalorder %s35, 0
      %p301 = por %p299, %p300
      %s303 = sadd.s32 %s302, 1
      %p306 = scmp.eq.s32.totalorder %s29, 3
      %p307 = scmp.ne.s32.totalorder %s302, %s304
      %p308 = scmp.eq.s32.totalorder %s29, 0
      %p309 = por %p307, %p308
      %p310 = scmp.ne.s32.totalorder %s302, %s304
      %p311 = scmp.eq.s32.totalorder %s34, 3
      %p312 = por %p310, %p311
      %p313 = scmp.ne.s32.totalorder %s304, %s305
      %p314 = scmp.eq.s32.totalorder %s34, 0
      %p315 = por %p313, %p314
      %p316 = scmp.ne.s32.totalorder %s304, %s305
      %p317 = scmp.eq.s32.totalorder %s35, 3
      %p318 = por %p316, %p317
      %p320 = scmp.ne.s32.totalorder %s305, %s319
      %p321 = scmp.eq.s32.totalorder %s35, 0
      %p322 = por %p320, %p321
      %s324 = sadd.s32 %s323, 1
      %p327 = scmp.eq.s32.totalorder %s29, 3
      %p328 = scmp.ne.s32.totalorder %s323, %s325
      %p329 = scmp.eq.s32.totalorder %s29, 0
      %p330 = por %p328, %p329
      %p331 = scmp.ne.s32.totalorder %s323, %s325
      %p332 = scmp.eq.s32.totalorder %s34, 3
      %p333 = por %p331, %p332
      %p334 = scmp.ne.s32.totalorder %s325, %s326
      %p335 = scmp.eq.s32.totalorder %s34, 0
      %p336 = por %p334, %p335
      %p337 = scmp.ne.s32.totalorder %s325, %s326
      %p338 = scmp.eq.s32.totalorder %s35, 3
      %p339 = por %p337, %p338
      %p341 = scmp.ne.s32.totalorder %s326, %s340
      %p342 = scmp.eq.s32.totalorder %s35, 0
      %p343 = por %p341, %p342
      %s345 = sadd.s32 %s344, 1
      %p348 = scmp.eq.s32.totalorder %s29, 3
      %p349 = scmp.ne.s32.totalorder %s344, %s346
      %p350 = scmp.eq.s32.totalorder %s29, 0
      %p351 = por %p349, %p350
      %p352 = scmp.ne.s32.totalorder %s344, %s346
      %p353 = scmp.eq.s32.totalorder %s34, 3
      %p354 = por %p352, %p353
      %p355 = scmp.ne.s32.totalorder %s346, %s347
      %p356 = scmp.eq.s32.totalorder %s34, 0
      %p357 = por %p355, %p356
      %p358 = scmp.ne.s32.totalorder %s346, %s347
      %p359 = scmp.eq.s32.totalorder %s35, 3
      %p360 = por %p358, %p359
      %p362 = scmp.ne.s32.totalorder %s347, %s361
      %p363 = scmp.eq.s32.totalorder %s35, 0
      %p364 = por %p362, %p363
      %s366 = sadd.s32 %s365, 1
      %p369 = scmp.eq.s32.totalorder %s29, 3
      %p370 = scmp.ne.s32.totalorder %s365, %s367
      %p371 = scmp.eq.s32.totalorder %s29, 0
      %p372 = por %p370, %p371
      %p373 = scmp.ne.s32.totalorder %s365, %s367
      %p374 = scmp.eq.s32.totalorder %s34, 3
      %p375 = por %p373, %p374
      %p376 = scmp.ne.s32.totalorder %s367, %s368
      %p377 = scmp.eq.s32.totalorder %s34, 0
      %p378 = por %p376, %p377
      %p379 = scmp.ne.s32.totalorder %s367, %s368
      %p380 = scmp.eq.s32.totalorder %s35, 3
      %p381 = por %p379, %p380
      %p383 = scmp.ne.s32.totalorder %s368, %s382
      %p384 = scmp.eq.s32.totalorder %s35, 0
      %p385 = por %p383, %p384
      %s386 = ssub.s32 %s36, %s48
      %s387 = ssub.s32 %s37, %s44
      %s388 = sor.u32 %s386, %s387
      %p389 = scmp.eq.s32.totalorder %s388, 0
      %s391 = sadd.s32 %s390, 1
      %s392 = scalar_select %p389, %s390, %s391
      %p395 = pneg %p389
      %p396 = scmp.eq.s32.totalorder %s29, 3
      %p397 = por %p395, %p396
      %p398 = scmp.ne.s32.totalorder %s390, %s393
      %p399 = scmp.eq.s32.totalorder %s29, 0
      %p400 = por %p398, %p399
      %p401 = scmp.ne.s32.totalorder %s390, %s393
      %p402 = scmp.eq.s32.totalorder %s34, 3
      %p403 = por %p401, %p402
      %p404 = scmp.ne.s32.totalorder %s393, %s394
      %p405 = scmp.eq.s32.totalorder %s34, 0
      %p406 = por %p404, %p405
      %p407 = scmp.ne.s32.totalorder %s393, %s394
      %p408 = scmp.eq.s32.totalorder %s35, 3
      %p409 = por %p407, %p408
      %p411 = scmp.ne.s32.totalorder %s394, %s410
      %p412 = scmp.eq.s32.totalorder %s35, 0
      %p413 = por %p411, %p412
      %p414 = scmp.le.s32.totalorder 1, %s29
      %p415 = scmp.lt.s32.totalorder %s29, 5
      %p416 = pnand %p414, %p415
      %p417 = pneg %p416
      // Predicated region
      $region9: #{tpu_custom_call.1} parent=5 // pred_check
        _
      $region10: #{tpu_custom_call.1} parent=5 // pred_check_branch
        %419 = sbr.rel (%p416) target = $region12
      $region11: #{tpu_custom_call.1} parent=5 // pred_region
        %s420 = ssub.s32 %s29, 1
        // Predicated region
        $region13: #{tpu_custom_call.1} parent=11 // pred_check
          %p421 = pneg %p142
        $region14: #{tpu_custom_call.1} parent=11 // pred_check_branch
          %423 = sbr.rel (%p421) target = $region16
        $region15: #{tpu_custom_call.1} parent=11 // pred_region
          _
        $region16: #{tpu_custom_call.1} parent=11 // pred_fallthru
          _
        // Predicated region
        $region17: #{tpu_custom_call.1} parent=11 // pred_check
          %p424 = pneg %p189
        $region18: #{tpu_custom_call.1} parent=11 // pred_check_branch
          %426 = sbr.rel (%p424) target = $region20
        $region19: #{tpu_custom_call.1} parent=11 // pred_region
          _
        $region20: #{tpu_custom_call.1} parent=11 // pred_fallthru
          _
        // Predicated region
        $region21: #{tpu_custom_call.1} parent=11 // pred_check
          %p427 = pneg %p210
        $region22: #{tpu_custom_call.1} parent=11 // pred_check_branch
          %429 = sbr.rel (%p427) target = $region24
        $region23: #{tpu_custom_call.1} parent=11 // pred_region
          %s431 = ssub.s32 16, 16
          %432 = vsyncadd [#allocation8], %s431
          %s434 = sshll.u32 [#allocation7], 4
          %s435 = int_to_ptr.vmem [resolvable:$true] %s434
          %437 = dma.hbm_to_vmem [thread:$0]  %s6, 16, %s435, [#allocation8]
        $region24: #{tpu_custom_call.1} parent=11 // pred_fallthru
          _
        // Predicated region
        $region25: #{tpu_custom_call.1} parent=11 // pred_check
          %p438 = pneg %p231
        $region26: #{tpu_custom_call.1} parent=11 // pred_check_branch
          %440 = sbr.rel (%p438) target = $region28
        $region27: #{tpu_custom_call.1} parent=11 // pred_region
          _
        $region28: #{tpu_custom_call.1} parent=11 // pred_fallthru
          _
        // Predicated region
        $region29: #{tpu_custom_call.1} parent=11 // pred_check
          %p441 = pneg %p252
        $region30: #{tpu_custom_call.1} parent=11 // pred_check_branch
          %443 = sbr.rel (%p441) target = $region32
        $region31: #{tpu_custom_call.1} parent=11 // pred_region
          %s445 = ssub.s32 16, 16
          %446 = vsyncadd [#allocation8], %s445
          %s448 = sshll.u32 [#allocation9], 4
          %s449 = int_to_ptr.vmem [resolvable:$true] %s448
          %451 = dma.hbm_to_vmem [thread:$0]  %s8, 16, %s449, [#allocation8]
        $region32: #{tpu_custom_call.1} parent=11 // pred_fallthru
          _
        // Predicated region
        $region33: #{tpu_custom_call.1} parent=11 // pred_check
          %p452 = pneg %p273
        $region34: #{tpu_custom_call.1} parent=11 // pred_check_branch
          %454 = sbr.rel (%p452) target = $region36
        $region35: #{tpu_custom_call.1} parent=11 // pred_region
          _
        $region36: #{tpu_custom_call.1} parent=11 // pred_fallthru
          _
        // Predicated region
        $region37: #{tpu_custom_call.1} parent=11 // pred_check
          %p455 = pneg %p294
        $region38: #{tpu_custom_call.1} parent=11 // pred_check_branch
          %457 = sbr.rel (%p455) target = $region40
        $region39: #{tpu_custom_call.1} parent=11 // pred_region
          _
        $region40: #{tpu_custom_call.1} parent=11 // pred_fallthru
          _
        // Predicated region
        $region41: #{tpu_custom_call.1} parent=11 // pred_check
          %p458 = pneg %p315
        $region42: #{tpu_custom_call.1} parent=11 // pred_check_branch
          %460 = sbr.rel (%p458) target = $region44
        $region43: #{tpu_custom_call.1} parent=11 // pred_region
          %s462 = ssub.s32 256, 256
          %463 = vsyncadd [#allocation11], %s462
          %s464 = sshll.u32 [#allocation10], 4
          %s465 = int_to_ptr.vmem [resolvable:$true] %s464
          %470 = dma.hbm_to_vmem [thread:$0]  %s11, 256, %s465, [#allocation11], 64, 64, 4
        $region44: #{tpu_custom_call.1} parent=11 // pred_fallthru
          _
        // Predicated region
        $region45: #{tpu_custom_call.1} parent=11 // pred_check
          %p471 = pneg %p336
        $region46: #{tpu_custom_call.1} parent=11 // pred_check_branch
          %473 = sbr.rel (%p471) target = $region48
        $region47: #{tpu_custom_call.1} parent=11 // pred_region
          _
        $region48: #{tpu_custom_call.1} parent=11 // pred_fallthru
          _
        // Predicated region
        $region49: #{tpu_custom_call.1} parent=11 // pred_check
          %p474 = pneg %p357
        $region50: #{tpu_custom_call.1} parent=11 // pred_check_branch
          %476 = sbr.rel (%p474) target = $region52
        $region51: #{tpu_custom_call.1} parent=11 // pred_region
          _
        $region52: #{tpu_custom_call.1} parent=11 // pred_fallthru
          _
        // Predicated region
        $region53: #{tpu_custom_call.1} parent=11 // pred_check
          %p477 = pneg %p378
        $region54: #{tpu_custom_call.1} parent=11 // pred_check_branch
          %479 = sbr.rel (%p477) target = $region56
        $region55: #{tpu_custom_call.1} parent=11 // pred_region
          _
        $region56: #{tpu_custom_call.1} parent=11 // pred_fallthru
          _
      $region12: #{tpu_custom_call.1} parent=5 // pred_fallthru
        _
      %p480 = scmp.lt.s32.totalorder %s29, 4
      // Predicated region
      $region57: #{tpu_custom_call.1} parent=5 // pred_check
        %p481 = pneg %p480
      $region58: #{tpu_custom_call.1} parent=5 // pred_check_branch
        %483 = sbr.rel (%p481) target = $region60
      $region59: #{tpu_custom_call.1} parent=5 // pred_region
        // Predicated region
        $region61: #{tpu_custom_call.1} parent=59 // pred_check
          %p484 = pneg %p63
        $region62: #{tpu_custom_call.1} parent=59 // pred_check_branch
          %486 = sbr.rel (%p484) target = $region64
        $region63: #{tpu_custom_call.1} parent=59 // pred_region
          %p487 = scmp.lt.s32.totalorder %s36, 1
          %s488 = scalar_select %p487, %s36, 1
          %p489 = scmp.lt.s32.totalorder %s37, 1
          %s490 = scalar_select %p489, %s37, 1
          %s491 = smul.addr %s488, 2
          %s492 = sadd.s32 %s490, %s491
          %s493 = smul.addr %s492, 4
          %s494 = scalar_lea.vmem %s0, %s493
        $region64: #{tpu_custom_call.1} parent=59 // pred_fallthru
          _
        // Predicated region
        $region65: #{tpu_custom_call.1} parent=59 // pred_check
          %p495 = pneg %p89
        $region66: #{tpu_custom_call.1} parent=59 // pred_check_branch
          %497 = sbr.rel (%p495) target = $region68
        $region67: #{tpu_custom_call.1} parent=59 // pred_region
          %p498 = scmp.lt.s32.totalorder %s36, 1
          %s499 = scalar_select %p498, %s36, 1
          %s500 = smul.addr %s499, 2
          %s501 = smul.addr %s500, 4
          %s502 = scalar_lea.vmem %s1, %s501
        $region68: #{tpu_custom_call.1} parent=59 // pred_fallthru
          _
        // Predicated region
        $region69: #{tpu_custom_call.1} parent=59 // pred_check
          %p503 = pneg %p115
        $region70: #{tpu_custom_call.1} parent=59 // pred_check_branch
          %505 = sbr.rel (%p503) target = $region72
        $region71: #{tpu_custom_call.1} parent=59 // pred_region
          %p506 = scmp.lt.s32.totalorder %s36, 1
          %s507 = scalar_select %p506, %s36, 1
          %s508 = smul.addr %s507, 2
          %s509 = smul.addr %s508, 4
          %s510 = scalar_lea.vmem %s2, %s509
        $region72: #{tpu_custom_call.1} parent=59 // pred_fallthru
          _
        // Predicated region
        $region73: #{tpu_custom_call.1} parent=59 // pred_check
          %p511 = pneg %p162
        $region74: #{tpu_custom_call.1} parent=59 // pred_check_branch
          %513 = sbr.rel (%p511) target = $region76
        $region75: #{tpu_custom_call.1} parent=59 // pred_region
          %s514 = sand.u32 %s152, 1
          %s515 = scalar_lea.sflag [#allocation5], %s514
          %s516 = sand.u32 %s152, 1
          %s517 = scalar_lea.vmem [#allocation4], %s516
          %s519 = ssub.s32 16, 16
          %520 = vsyncadd %s515, %s519
          %s521 = smul.addr %s36, 16
          %s522 = scalar_lea.hbm %s4, %s521
          %s524 = sshll.u32 %s517, 4
          %s525 = int_to_ptr.vmem [resolvable:$true] %s524
          %527 = dma.hbm_to_vmem [thread:$0]  %s522, 16, %s525, %s515
        $region76: #{tpu_custom_call.1} parent=59 // pred_fallthru
          _
      $region60: #{tpu_custom_call.1} parent=5 // pred_fallthru
        _
      %p528 = scmp.le.s32.totalorder 1, %s29
      %p529 = scmp.lt.s32.totalorder %s29, 5
      %p530 = pnand %p528, %p529
      %p531 = pneg %p530
      // Predicated region
      $region77: #{tpu_custom_call.1} parent=5 // pred_check
        _
      $region78: #{tpu_custom_call.1} parent=5 // pred_check_branch
        %533 = sbr.rel (%p530) target = $region80
      $region79: #{tpu_custom_call.1} parent=5 // pred_region
        %s534 = ssub.s32 %s29, 1
        %s535 = sand.u32 %s155, 1
        %s536 = scalar_lea.sflag [#allocation5], %s535
        %s537 = sand.u32 %s155, 1
        %s538 = scalar_lea.vmem [#allocation4], %s537
        // Predicated region
        $region81: #{tpu_custom_call.1} parent=79 // pred_check
          %p539 = pneg %p168
        $region82: #{tpu_custom_call.1} parent=79 // pred_check_branch
          %541 = sbr.rel (%p539) target = $region84
        $region83: #{tpu_custom_call.1} parent=79 // pred_region
          %542 = dma.done %s536, 16
        $region84: #{tpu_custom_call.1} parent=79 // pred_fallthru
          _
        // Predicated region
        $region85: #{tpu_custom_call.1} parent=79 // pred_check
          %p543 = pneg %p210
        $region86: #{tpu_custom_call.1} parent=79 // pred_check_branch
          %545 = sbr.rel (%p543) target = $region88
        $region87: #{tpu_custom_call.1} parent=79 // pred_region
          %546 = dma.done [#allocation8], 16
        $region88: #{tpu_custom_call.1} parent=79 // pred_fallthru
          _
        // Predicated region
        $region89: #{tpu_custom_call.1} parent=79 // pred_check
          %p547 = pneg %p252
        $region90: #{tpu_custom_call.1} parent=79 // pred_check_branch
          %549 = sbr.rel (%p547) target = $region92
        $region91: #{tpu_custom_call.1} parent=79 // pred_region
          %550 = dma.done [#allocation8], 16
        $region92: #{tpu_custom_call.1} parent=79 // pred_fallthru
          _
        // Predicated region
        $region93: #{tpu_custom_call.1} parent=79 // pred_check
          %p551 = pneg %p315
        $region94: #{tpu_custom_call.1} parent=79 // pred_check_branch
          %553 = sbr.rel (%p551) target = $region96
        $region95: #{tpu_custom_call.1} parent=79 // pred_region
          %554 = dma.done [#allocation11], 256
        $region96: #{tpu_custom_call.1} parent=79 // pred_fallthru
          _
        %p555 = scmp.lt.s32.totalorder %s38, 1
        %s556 = scalar_select %p555, %s38, 1
        %p557 = scmp.lt.s32.totalorder %s39, 1
        %s558 = scalar_select %p557, %s39, 1
        %s559 = smul.addr %s556, 2
        %s560 = sadd.s32 %s558, %s559
        %s561 = smul.addr %s560, 4
        %s562 = scalar_lea.vmem %s0, %s561
        %p563 = pneg %p69
        %p564 = pneg %p66
        %p565 = scmp.lt.s32.totalorder %s38, 1
        %s566 = scalar_select %p565, %s38, 1
        %s567 = smul.addr %s566, 2
        %s568 = smul.addr %s567, 4
        %s569 = scalar_lea.vmem %s1, %s568
        %p570 = pneg %p95
        %p571 = pneg %p92
        %p572 = scmp.lt.s32.totalorder %s38, 1
        %s573 = scalar_select %p572, %s38, 1
        %s574 = smul.addr %s573, 2
        %s575 = smul.addr %s574, 4
        %s576 = scalar_lea.vmem %s2, %s575
        %p577 = pneg %p121
        %p578 = pneg %p118
        %p579 = pneg %p142
        %p580 = pneg %p139
        %s581 = sand.u32 %s155, 1
        %s582 = scalar_lea.sflag [#allocation5], %s581
        %s583 = sand.u32 %s155, 1
        %s584 = scalar_lea.vmem [#allocation4], %s583
        %p585 = pneg %p168
        %p586 = pneg %p165
        %p587 = pneg %p189
        %p588 = pneg %p186
        %p589 = pneg %p210
        %p590 = pneg %p207
        %p591 = pneg %p231
        %p592 = pneg %p228
        %p593 = pneg %p252
        %p594 = pneg %p249
        %p595 = pneg %p273
        %p596 = pneg %p270
        %p597 = pneg %p294
        %p598 = pneg %p291
        %p599 = pneg %p315
        %p600 = pneg %p312
        %p601 = pneg %p336
        %p602 = pneg %p333
        %p603 = pneg %p357
        %p604 = pneg %p354
        %p605 = pneg %p378
        %p606 = pneg %p375
        %p607 = pneg %p406
        %p608 = pneg %p403
        %s609 = sand.u32 %s393, 1
        %s610 = scalar_lea.sflag [#allocation6], %s609
        %s611 = sand.u32 %s393, 1
        %s612 = smul.addr %s611, 8
        %s613 = scalar_lea.vmem [#allocation12], %s612
        %p614 = scmp.lt.s32.totalorder %s38, 1
        %s615 = scalar_select %p614, %s38, 1
        %p616 = scmp.lt.s32.totalorder %s39, 1
        %s617 = scalar_select %p616, %s39, 1
        %s618 = smul.addr %s615, 2
        %s619 = sadd.s32 %s617, %s618
        %s620 = smul.addr %s619, 4
        %s621 = scalar_lea.vmem %s0, %s620
        %p622 = scmp.lt.s32.totalorder %s38, 1
        %s623 = scalar_select %p622, %s38, 1
        %s624 = smul.addr %s623, 2
        %s625 = smul.addr %s624, 4
        %s626 = scalar_lea.vmem %s1, %s625
        %p627 = scmp.lt.s32.totalorder %s38, 1
        %s628 = scalar_select %p627, %s38, 1
        %s629 = smul.addr %s628, 2
        %s630 = smul.addr %s629, 4
        %s631 = scalar_lea.vmem %s2, %s630
        %p633 = scmp.eq.s32.totalorder %s39, 0
        // Predicated region
        $region97: #{tpu_custom_call.1} parent=79 // pred_check
          %p634 = pneg %p633
        $region98: #{tpu_custom_call.1} parent=79 // pred_check_branch
          %636 = sbr.rel (%p634) target = $region100
        $region99: #{tpu_custom_call.1} parent=79 // pred_region
          %v637 = vld [vmem:[%s626] sm:$0xf]
          %v638 = vld [vmem:[%s626 + $0x4] sm:$0xf]
          %v639 = vld [vmem:[%s7] sm:$0xf]
          %v640 = vld [vmem:[%s7 + $0x4] sm:$0xf]
          %v641 = vld [vmem:[%s7 + $0x8] sm:$0xf]
          %v642 = vld [vmem:[%s7 + $0xc] sm:$0xf]
          %v643 = vld [vmem:[#allocation9] sm:$0x1]
          %v645 = vlaneseq
          %v646 = vshrl.u32 %v645, 7
          %v647 = vsub.s32 0, %v646
          %v648 = vrot.slane %v643, %v647
          %v652 = vunpack.c.l.b16 %v637
          %v653 = vunpack.c.l.b16 %v638
          %v654 = vpack.c.b16 %v653, %v652
          %v659 = vunpack.c.l.b16 %v639
          %v660 = vunpack.c.l.b16 %v640
          %v661 = vunpack.c.l.b16 %v641
          %v662 = vunpack.c.l.b16 %v642
          %v663 = vpack.c.b16 %v660, %v659
          %v664 = vpack.c.b16 %v662, %v661
          %vm667 = vcmask 261120
          %v669 = vsel %vm667, %v654, 0
          %671 = vmatprep.subr.bf16.mxu0 0
          %672 = vmatpush1.bf16.msra.mxu0 0
          %673 = vmatprep.subr.bf16.mxu0 0
          %674 = vmatpush1.bf16.msra.mxu0 0
          %675 = vmatprep.subr.bf16.mxu0 0
          %676 = vmatpush1.bf16.msra.mxu0 0
          %677 = vmatprep.subr.bf16.mxu0 0
          %678 = vmatpush1.bf16.msra.mxu0 0
          %679 = vmatprep.subr.bf16.mxu0 0
          %680 = vmatpush1.bf16.msra.mxu0 0
          %681 = vmatprep.subr.bf16.mxu0 0
          %682 = vmatpush1.bf16.msra.mxu0 0
          %683 = vmatprep.subr.bf16.mxu0 0
          %684 = vmatpush1.bf16.msra.mxu0 %v664
          %685 = vmatprep.subr.bf16.mxu0 0
          %686 = vmatpush1.bf16.msra.mxu0 %v663
          %687 = vmatprep.subr.bf16.mxu0 0
          %688 = vmatpush2.bf16.msra.mxu0 0
          %689 = vmatprep.subr.bf16.mxu0 0
          %690 = vmatpush2.bf16.msra.mxu0 0
          %691 = vmatprep.subr.bf16.mxu0 0
          %692 = vmatpush2.bf16.msra.mxu0 0
          %693 = vmatprep.subr.bf16.mxu0 0
          %694 = vmatpush2.bf16.msra.mxu0 0
          %695 = vmatprep.subr.bf16.mxu0 0
          %696 = vmatpush2.bf16.msra.mxu0 0
          %697 = vmatprep.subr.bf16.mxu0 0
          %698 = vmatpush2.bf16.msra.mxu0 0
          %699 = vmatprep.subr.bf16.mxu0 0
          %700 = vmatpush2.bf16.msra.mxu0 0
          %701 = vmatprep.subr.bf16.mxu0 0
          %702 = vmatpush2.bf16.msra.mxu0 0
          %703 = vmatprep.mubr.bf16.mxu0 0
          %704 = vmatmul.mubr.bf16.gmra.mxu0 %v669
          %v705 = vpop.f32.mrf.mxu0
          %v706 = vadd.f32 %v648, %v705
          %v707 = vpop.f32.mrf.mxu0
          %v708 = vpop.f32.mrf.mxu0
          %v709 = vadd.f32 %v648, %v708
          %v710 = vpop.f32.mrf.mxu0
          %711 = vdwg.mxu0
          %v712 = vld [vmem:[%s631] sm:$0xf]
          %v713 = vld [vmem:[%s631 + $0x4] sm:$0xf]
          %v714 = vld [vmem:[%s9] sm:$0xf]
          %v715 = vld [vmem:[%s9 + $0x4] sm:$0xf]
          %v716 = vld [vmem:[%s9 + $0x8] sm:$0xf]
          %v717 = vld [vmem:[%s9 + $0xc] sm:$0xf]
          %v718 = vld [vmem:[%s10] sm:$0x1]
          %v720 = vlaneseq
          %v721 = vshrl.u32 %v720, 7
          %v722 = vsub.s32 0, %v721
          %v723 = vrot.slane %v718, %v722
          %v727 = vunpack.c.l.b16 %v712
          %v728 = vunpack.c.l.b16 %v713
          %v729 = vpack.c.b16 %v728, %v727
          %v734 = vunpack.c.l.b16 %v714
          %v735 = vunpack.c.l.b16 %v715
          %v736 = vunpack.c.l.b16 %v716
          %v737 = vunpack.c.l.b16 %v717
          %v738 = vpack.c.b16 %v735, %v734
          %v739 = vpack.c.b16 %v737, %v736
          %v743 = vsel %vm667, %v729, 0
          %745 = vmatprep.subr.bf16.mxu0 0
          %746 = vmatpush1.bf16.msra.mxu0 0
          %747 = vmatprep.subr.bf16.mxu0 0
          %748 = vmatpush1.bf16.msra.mxu0 0
          %749 = vmatprep.subr.bf16.mxu0 0
          %750 = vmatpush1.bf16.msra.mxu0 0
          %751 = vmatprep.subr.bf16.mxu0 0
          %752 = vmatpush1.bf16.msra.mxu0 0
          %753 = vmatprep.subr.bf16.mxu0 0
          %754 = vmatpush1.bf16.msra.mxu0 0
          %755 = vmatprep.subr.bf16.mxu0 0
          %756 = vmatpush1.bf16.msra.mxu0 0
          %757 = vmatprep.subr.bf16.mxu0 0
          %758 = vmatpush1.bf16.msra.mxu0 %v739
          %759 = vmatprep.subr.bf16.mxu0 0
          %760 = vmatpush1.bf16.msra.mxu0 %v738
          %761 = vmatprep.subr.bf16.mxu0 0
          %762 = vmatpush2.bf16.msra.mxu0 0
          %763 = vmatprep.subr.bf16.mxu0 0
          %764 = vmatpush2.bf16.msra.mxu0 0
          %765 = vmatprep.subr.bf16.mxu0 0
          %766 = vmatpush2.bf16.msra.mxu0 0
          %767 = vmatprep.subr.bf16.mxu0 0
          %768 = vmatpush2.bf16.msra.mxu0 0
          %769 = vmatprep.subr.bf16.mxu0 0
          %770 = vmatpush2.bf16.msra.mxu0 0
          %771 = vmatprep.subr.bf16.mxu0 0
          %772 = vmatpush2.bf16.msra.mxu0 0
          %773 = vmatprep.subr.bf16.mxu0 0
          %774 = vmatpush2.bf16.msra.mxu0 0
          %775 = vmatprep.subr.bf16.mxu0 0
          %776 = vmatpush2.bf16.msra.mxu0 0
          %777 = vmatprep.mubr.bf16.mxu0 0
          %778 = vmatmul.mubr.bf16.gmra.mxu0 %v743
          %v779 = vpop.f32.mrf.mxu0
          %v780 = vadd.f32 %v723, %v779
          %v781 = vpop.f32.mrf.mxu0
          %v782 = vpop.f32.mrf.mxu0
          %v783 = vadd.f32 %v723, %v782
          %v784 = vpop.f32.mrf.mxu0
          %785 = vdwg.mxu0
          %v786 = vpack.c.bf16 %v709, %v706
          %v788 = vunpack.c.l.b16 %v786
          %v789 = vunpack.c.h.b16 %v786
          %v790 = vpack.c.b16 %v788, %v788
          %v791 = vpack.c.b16 %v789, %v789
          %vm794 = vcmask 257024
          %795 = vst.msk [vmem:[#allocation2] sm:$0xf] %vm794, %v790
          %796 = vst.msk [vmem:[#allocation2 + $0x4] sm:$0xf] %vm794, %v791
          %v797 = vpack.c.bf16 %v783, %v780
          %v799 = vunpack.c.l.b16 %v797
          %v800 = vunpack.c.h.b16 %v797
          %v801 = vpack.c.b16 %v799, %v799
          %v802 = vpack.c.b16 %v800, %v800
          %805 = vst.msk [vmem:[#allocation3] sm:$0xf] %vm794, %v801
          %806 = vst.msk [vmem:[#allocation3 + $0x4] sm:$0xf] %vm794, %v802
        $region100: #{tpu_custom_call.1} parent=79 // pred_fallthru
          _
        %v807 = vld [vmem:[%s621] sm:$0xf]
        %v808 = vld [vmem:[%s5] sm:$0xf]
        %v809 = vld [vmem:[%s5 + $0x4] sm:$0xf]
        %v810 = vld [vmem:[%s5 + $0x8] sm:$0xf]
        %v811 = vld [vmem:[%s5 + $0xc] sm:$0xf]
        %v812 = vld [vmem:[#allocation7] sm:$0x1]
        %v814 = vlaneseq
        %v815 = vshrl.u32 %v814, 7
        %v816 = vsub.s32 0, %v815
        %v817 = vrot.slane %v812, %v816
        %v823 = vunpack.c.l.b16 %v808
        %v824 = vunpack.c.l.b16 %v809
        %v825 = vunpack.c.l.b16 %v810
        %v826 = vunpack.c.l.b16 %v811
        %v827 = vpack.c.b16 %v824, %v823
        %v828 = vpack.c.b16 %v826, %v825
        %vm831 = vcmask 261120
        %v833 = vsel %vm831, %v807, 0
        %835 = vmatprep.subr.bf16.mxu0 0
        %836 = vmatpush1.bf16.msra.mxu0 0
        %837 = vmatprep.subr.bf16.mxu0 0
        %838 = vmatpush1.bf16.msra.mxu0 0
        %839 = vmatprep.subr.bf16.mxu0 0
        %840 = vmatpush1.bf16.msra.mxu0 0
        %841 = vmatprep.subr.bf16.mxu0 0
        %842 = vmatpush1.bf16.msra.mxu0 0
        %843 = vmatprep.subr.bf16.mxu0 0
        %844 = vmatpush1.bf16.msra.mxu0 0
        %845 = vmatprep.subr.bf16.mxu0 0
        %846 = vmatpush1.bf16.msra.mxu0 0
        %847 = vmatprep.subr.bf16.mxu0 0
        %848 = vmatpush1.bf16.msra.mxu0 %v828
        %849 = vmatprep.subr.bf16.mxu0 0
        %850 = vmatpush1.bf16.msra.mxu0 %v827
        %851 = vmatprep.subr.bf16.mxu0 0
        %852 = vmatpush2.bf16.msra.mxu0 0
        %853 = vmatprep.subr.bf16.mxu0 0
        %854 = vmatpush2.bf16.msra.mxu0 0
        %855 = vmatprep.subr.bf16.mxu0 0
        %856 = vmatpush2.bf16.msra.mxu0 0
        %857 = vmatprep.subr.bf16.mxu0 0
        %858 = vmatpush2.bf16.msra.mxu0 0
        %859 = vmatprep.subr.bf16.mxu0 0
        %860 = vmatpush2.bf16.msra.mxu0 0
        %861 = vmatprep.subr.bf16.mxu0 0
        %862 = vmatpush2.bf16.msra.mxu0 0
        %863 = vmatprep.subr.bf16.mxu0 0
        %864 = vmatpush2.bf16.msra.mxu0 0
        %865 = vmatprep.subr.bf16.mxu0 0
        %866 = vmatpush2.bf16.msra.mxu0 0
        %867 = vmatprep.mubr.bf16.mxu0 0
        %868 = vmatmul.mubr.bf16.gmra.mxu0 %v833
        %v869 = vpop.f32.mrf.mxu0
        %v870 = vadd.f32 %v817, %v869
        %v871 = vpop.f32.mrf.mxu0
        %v872 = vpop.f32.mrf.mxu0
        %v873 = vpop.f32.mrf.mxu0
        %874 = vdwg.mxu0
        %v875 = vld [vmem:[%s13] sm:$0x1]
        %v877 = vlaneseq
        %v878 = vshrl.u32 %v877, 7
        %v879 = vsub.s32 0, %v878
        %v880 = vrot.slane %v875, %v879
        %v882 = vadd.f32 %v870, %v880
        %v883 = vpack.c.bf16 %v882, %v882
        %v884 = vld [vmem:[%s14] sm:$0x1]
        %v886 = vlaneseq
        %v887 = vshrl.u32 %v886, 7
        %v888 = vsub.s32 0, %v887
        %v889 = vrot.slane %v884, %v888
        %v891 = vadd.f32 %v870, %v889
        %v892 = vpack.c.bf16 %v891, %v891
        %v893 = vld [vmem:[#allocation2] sm:$0xf]
        %v894 = vld [vmem:[#allocation2 + $0x4] sm:$0xf]
        %v895 = vld [vmem:[#allocation3] sm:$0xf]
        %v896 = vld [vmem:[#allocation3 + $0x4] sm:$0xf]
        %v897 = vld [vmem:[%s3] sm:$0xf]
        %v898 = vld [vmem:[%s3 + $0x4] sm:$0xf]
        %v899 = vld [vmem:[%s3 + $0x8] sm:$0xf]
        %v900 = vld [vmem:[%s3 + $0xc] sm:$0xf]
        %v901 = vld [vmem:[%s3 + $0x10] sm:$0xf]
        %v902 = vld [vmem:[%s3 + $0x14] sm:$0xf]
        %v903 = vld [vmem:[%s3 + $0x18] sm:$0xf]
        %v904 = vld [vmem:[%s3 + $0x1c] sm:$0xf]
        %v905 = vld [vmem:[%s3 + $0x20] sm:$0xf]
        %v906 = vld [vmem:[%s3 + $0x24] sm:$0xf]
        %v907 = vld [vmem:[%s3 + $0x28] sm:$0xf]
        %v908 = vld [vmem:[%s3 + $0x2c] sm:$0xf]
        %v909 = vld [vmem:[%s3 + $0x30] sm:$0xf]
        %v910 = vld [vmem:[%s3 + $0x34] sm:$0xf]
        %v911 = vld [vmem:[%s3 + $0x38] sm:$0xf]
        %v912 = vld [vmem:[%s3 + $0x3c] sm:$0xf]
        %v913 = vld [vmem:[%s538] sm:$0x1]
        %v914 = vsub.f32 %v913, 1.0
        %v915 = vmul.f32 %v914, 1e+30
        %s916 = smul.u32 %s39, 8
        %s917 = sadd.s32 %s916, 113
        %p918 = scmp.lt.s32.totalorder %s917, 0
        %s919 = ssub.s32 0, %s917
        %s920 = scalar_select %p918, %s919, %s917
        %s921 = sand.u32 %s920, 127
        %s922 = ssub.s32 0, %s921
        %s923 = scalar_select %p918, %s922, %s921
        %p924 = scmp.ne.s32.totalorder %s923, 0
        %p925 = scmp.lt.s32.totalorder %s923, 0
        %p926 = pnand %p925, %p924
        %p927 = pneg %p926
        %s928 = sadd.s32 %s923, 128
        %s929 = scalar_select %p927, %s928, %s923
        %v946 = vunpack.c.l.b16 %v897
        %v947 = vunpack.c.l.b16 %v898
        %v948 = vunpack.c.l.b16 %v899
        %v949 = vunpack.c.l.b16 %v900
        %v950 = vunpack.c.l.b16 %v901
        %v951 = vunpack.c.l.b16 %v902
        %v952 = vunpack.c.l.b16 %v903
        %v953 = vunpack.c.l.b16 %v904
        %v954 = vunpack.c.l.b16 %v905
        %v955 = vunpack.c.l.b16 %v906
        %v956 = vunpack.c.l.b16 %v907
        %v957 = vunpack.c.l.b16 %v908
        %v958 = vunpack.c.l.b16 %v909
        %v959 = vunpack.c.l.b16 %v910
        %v960 = vunpack.c.l.b16 %v911
        %v961 = vunpack.c.l.b16 %v912
        %v962 = vpack.c.b16 %v947, %v946
        %v963 = vpack.c.b16 %v949, %v948
        %v964 = vpack.c.b16 %v951, %v950
        %v965 = vpack.c.b16 %v953, %v952
        %v966 = vpack.c.b16 %v955, %v954
        %v967 = vpack.c.b16 %v957, %v956
        %v968 = vpack.c.b16 %v959, %v958
        %v969 = vpack.c.b16 %v961, %v960
        %vm970 = vcmask 64512
        %v972 = vsel %vm970, %v892, 0
        %v975 = vsel %vm970, %v962, 0
        %v978 = vsel %vm970, %v963, 0
        %v981 = vsel %vm970, %v964, 0
        %v984 = vsel %vm970, %v965, 0
        %v987 = vsel %vm970, %v966, 0
        %v990 = vsel %vm970, %v967, 0
        %v993 = vsel %vm970, %v968, 0
        %v996 = vsel %vm970, %v969, 0
        %998 = vmatprep.subr.bf16.mxu0 0
        %999 = vmatpush1.bf16.xpose.msra.mxu0 %v996
        %1000 = vmatprep.subr.bf16.mxu0 0
        %1001 = vmatpush1.bf16.xpose.msra.mxu0 %v993
        %1002 = vmatprep.subr.bf16.mxu0 0
        %1003 = vmatpush1.bf16.xpose.msra.mxu0 %v990
        %1004 = vmatprep.subr.bf16.mxu0 0
        %1005 = vmatpush1.bf16.xpose.msra.mxu0 %v987
        %1006 = vmatprep.subr.bf16.mxu0 0
        %1007 = vmatpush1.bf16.xpose.msra.mxu0 %v984
        %1008 = vmatprep.subr.bf16.mxu0 0
        %1009 = vmatpush1.bf16.xpose.msra.mxu0 %v981
        %1010 = vmatprep.subr.bf16.mxu0 0
        %1011 = vmatpush1.bf16.xpose.msra.mxu0 %v978
        %1012 = vmatprep.subr.bf16.mxu0 0
        %1013 = vmatpush1.bf16.xpose.msra.mxu0 %v975
        %1014 = vmatprep.subr.bf16.mxu0 0
        %1015 = vmatpush2.bf16.xpose.msra.mxu0 0
        %1016 = vmatprep.subr.bf16.mxu0 0
        %1017 = vmatpush2.bf16.xpose.msra.mxu0 0
        %1018 = vmatprep.subr.bf16.mxu0 0
        %1019 = vmatpush2.bf16.xpose.msra.mxu0 0
        %1020 = vmatprep.subr.bf16.mxu0 0
        %1021 = vmatpush2.bf16.xpose.msra.mxu0 0
        %1022 = vmatprep.subr.bf16.mxu0 0
        %1023 = vmatpush2.bf16.xpose.msra.mxu0 0
        %1024 = vmatprep.subr.bf16.mxu0 0
        %1025 = vmatpush2.bf16.xpose.msra.mxu0 0
        %1026 = vmatprep.subr.bf16.mxu0 0
        %1027 = vmatpush2.bf16.xpose.msra.mxu0 0
        %1028 = vmatprep.subr.bf16.mxu0 0
        %1029 = vmatpush2.bf16.xpose.msra.mxu0 0
        %1030 = vmatprep.mubr.bf16.mxu0 0
        %1031 = vmatmul.mubr.bf16.gmra.mxu0 %v972
        %v1032 = vpop.f32.mrf.mxu0
        %v1033 = vadd.f32 0.0, %v1032
        %v1034 = vpop.f32.mrf.mxu0
        %v1035 = vpop.f32.mrf.mxu0
        %v1036 = vpop.f32.mrf.mxu0
        %1037 = vdwg.mxu0
        %s1038 = sand.u32 %s929, 127
        %s1039 = sand.u32 %s1038, 127
        %s1040 = sand.u32 %s1039, 127
        %s1041 = sand.u32 %s1040, 255
        %s1043 = sor.u32 256, %s1041
        %1044 = vrot.lane.b32.xlu0 %v1033, %s1043
        %v1045 = vpop.permute.xlu0 %1044
        %v1048 = vunpack.c.l.b16 %v893
        %v1049 = vunpack.c.l.b16 %v894
        %v1050 = vpack.c.b16 %v1049, %v1048
        %v1052 = vsel %vm970, %v883, 0
        %v1055 = vsel %vm970, %v1050, 0
        %1057 = vmatprep.subr.bf16.mxu0 0
        %1058 = vmatpush1.bf16.xpose.msra.mxu0 0
        %1059 = vmatprep.subr.bf16.mxu0 0
        %1060 = vmatpush1.bf16.xpose.msra.mxu0 0
        %1061 = vmatprep.subr.bf16.mxu0 0
        %1062 = vmatpush1.bf16.xpose.msra.mxu0 0
        %1063 = vmatprep.subr.bf16.mxu0 0
        %1064 = vmatpush1.bf16.xpose.msra.mxu0 0
        %1065 = vmatprep.subr.bf16.mxu0 0
        %1066 = vmatpush1.bf16.xpose.msra.mxu0 0
        %1067 = vmatprep.subr.bf16.mxu0 0
        %1068 = vmatpush1.bf16.xpose.msra.mxu0 0
        %1069 = vmatprep.subr.bf16.mxu0 0
        %1070 = vmatpush1.bf16.xpose.msra.mxu0 0
        %1071 = vmatprep.subr.bf16.mxu0 0
        %1072 = vmatpush1.bf16.xpose.msra.mxu0 %v1055
        %1073 = vmatprep.subr.bf16.mxu0 0
        %1074 = vmatpush2.bf16.xpose.msra.mxu0 0
        %1075 = vmatprep.subr.bf16.mxu0 0
        %1076 = vmatpush2.bf16.xpose.msra.mxu0 0
        %1077 = vmatprep.subr.bf16.mxu0 0
        %1078 = vmatpush2.bf16.xpose.msra.mxu0 0
        %1079 = vmatprep.subr.bf16.mxu0 0
        %1080 = vmatpush2.bf16.xpose.msra.mxu0 0
        %1081 = vmatprep.subr.bf16.mxu0 0
        %1082 = vmatpush2.bf16.xpose.msra.mxu0 0
        %1083 = vmatprep.subr.bf16.mxu0 0
        %1084 = vmatpush2.bf16.xpose.msra.mxu0 0
        %1085 = vmatprep.subr.bf16.mxu0 0
        %1086 = vmatpush2.bf16.xpose.msra.mxu0 0
        %1087 = vmatprep.subr.bf16.mxu0 0
        %1088 = vmatpush2.bf16.xpose.msra.mxu0 0
        %1089 = vmatprep.mubr.bf16.mxu0 0
        %1090 = vmatmul.mubr.bf16.gmra.mxu0 %v1052
        %v1091 = vpop.f32.mrf.mxu0
        %v1092 = vadd.f32 %v1045, %v1091
        %v1093 = vpop.f32.mrf.mxu0
        %v1094 = vpop.f32.mrf.mxu0
        %v1095 = vpop.f32.mrf.mxu0
        %1096 = vdwg.mxu0
        %v1098 = vlaneseq
        %v1099 = vshrl.u32 %v1098, 7
        %v1100 = vsub.s32 0, %v1099
        %v1101 = vrot.slane %v915, %v1100
        %v1103 = vadd.f32 %v1092, %v1101
        %vm1104 = vcmask 130048
        %v1105 = vsel %vm1104, %v1103, -inf
        %1106 = vmax.xlane.f32.xlu0 %v1105
        %v1107 = vpop.xlane.xlu0 %1106
        %v1108 = vsub.f32 %v1103, %v1107
        %v1109 = vmul.f32 %v1108, 1.442695
        %v1110 = vpow.pop %v1109
        %v1111 = vsel %vm1104, %v1110, 0.0
        %1112 = vadd.xlane.f32.xlu0 %v1111
        %v1113 = vpop.xlane.xlu0 %1112
        %v1114 = vrcp.pop %v1113
        %v1115 = vmul.f32 %v1110, %v1114
        %v1117 = vlaneseq
        %v1118 = vshrl.u32 %v1117, 7
        %v1119 = vsub.s32 0, %v1118
        %v1120 = vrot.slane %v913, %v1119
        %v1122 = vmul.f32 %v1115, %v1120
        %v1123 = vpack.c.bf16 %v1122, %v1122
        %v1126 = vunpack.c.l.b16 %v895
        %v1127 = vunpack.c.l.b16 %v896
        %v1128 = vpack.c.b16 %v1127, %v1126
        %v1131 = vsel %vm1104, %v1123, 0
        %1133 = vmatprep.subr.bf16.mxu0 0
        %1134 = vmatpush1.bf16.msra.mxu0 0
        %1135 = vmatprep.subr.bf16.mxu0 0
        %1136 = vmatpush1.bf16.msra.mxu0 0
        %1137 = vmatprep.subr.bf16.mxu0 0
        %1138 = vmatpush1.bf16.msra.mxu0 0
        %1139 = vmatprep.subr.bf16.mxu0 0
        %1140 = vmatpush1.bf16.msra.mxu0 0
        %1141 = vmatprep.subr.bf16.mxu0 0
        %1142 = vmatpush1.bf16.msra.mxu0 0
        %1143 = vmatprep.subr.bf16.mxu0 0
        %1144 = vmatpush1.bf16.msra.mxu0 0
        %1145 = vmatprep.subr.bf16.mxu0 0
        %1146 = vmatpush1.bf16.msra.mxu0 0
        %1147 = vmatprep.subr.bf16.mxu0 0
        %1148 = vmatpush1.bf16.msra.mxu0 %v1128
        %1149 = vmatprep.subr.bf16.mxu0 0
        %1150 = vmatpush2.bf16.msra.mxu0 0
        %1151 = vmatprep.subr.bf16.mxu0 0
        %1152 = vmatpush2.bf16.msra.mxu0 0
        %1153 = vmatprep.subr.bf16.mxu0 0
        %1154 = vmatpush2.bf16.msra.mxu0 0
        %1155 = vmatprep.subr.bf16.mxu0 0
        %1156 = vmatpush2.bf16.msra.mxu0 0
        %1157 = vmatprep.subr.bf16.mxu0 0
        %1158 = vmatpush2.bf16.msra.mxu0 0
        %1159 = vmatprep.subr.bf16.mxu0 0
        %1160 = vmatpush2.bf16.msra.mxu0 0
        %1161 = vmatprep.subr.bf16.mxu0 0
        %1162 = vmatpush2.bf16.msra.mxu0 0
        %1163 = vmatprep.subr.bf16.mxu0 0
        %1164 = vmatpush2.bf16.msra.mxu0 0
        %1165 = vmatprep.mubr.bf16.mxu0 0
        %1166 = vmatmul.mubr.bf16.gmra.mxu0 %v1131
        %v1167 = vpop.f32.mrf.mxu0
        %v1168 = vadd.f32 0.0, %v1167
        %v1169 = vpop.f32.mrf.mxu0
        %v1170 = vpop.f32.mrf.mxu0
        %v1171 = vpop.f32.mrf.mxu0
        %1172 = vdwg.mxu0
        %v1173 = vpack.c.bf16 %v1168, %v1168
        %v1174 = vld [vmem:[#allocation10] sm:$0xf]
        %1176 = vrot.lane.b32.xlu0 %v892, 120
        %v1177 = vpop.permute.xlu0 %1176
        %1178 = vrot.lane.b32.xlu0 %v962, 120
        %v1179 = vpop.permute.xlu0 %1178
        %1180 = vrot.lane.b32.xlu0 %v963, 120
        %v1181 = vpop.permute.xlu0 %1180
        %1182 = vrot.lane.b32.xlu0 %v964, 120
        %v1183 = vpop.permute.xlu0 %1182
        %1184 = vrot.lane.b32.xlu0 %v965, 120
        %v1185 = vpop.permute.xlu0 %1184
        %1186 = vrot.lane.b32.xlu0 %v966, 120
        %v1187 = vpop.permute.xlu0 %1186
        %1188 = vrot.lane.b32.xlu0 %v967, 120
        %v1189 = vpop.permute.xlu0 %1188
        %1190 = vrot.lane.b32.xlu0 %v968, 120
        %v1191 = vpop.permute.xlu0 %1190
        %1192 = vrot.lane.b32.xlu0 %v969, 120
        %v1193 = vpop.permute.xlu0 %1192
        %v1195 = vsel %vm970, %v1177, 0
        %v1198 = vsel %vm970, %v1179, 0
        %v1201 = vsel %vm970, %v1181, 0
        %v1204 = vsel %vm970, %v1183, 0
        %v1207 = vsel %vm970, %v1185, 0
        %v1210 = vsel %vm970, %v1187, 0
        %v1213 = vsel %vm970, %v1189, 0
        %v1216 = vsel %vm970, %v1191, 0
        %v1219 = vsel %vm970, %v1193, 0
        %1221 = vmatprep.subr.bf16.mxu0 0
        %1222 = vmatpush1.bf16.xpose.msra.mxu0 %v1219
        %1223 = vmatprep.subr.bf16.mxu0 0
        %1224 = vmatpush1.bf16.xpose.msra.mxu0 %v1216
        %1225 = vmatprep.subr.bf16.mxu0 0
        %1226 = vmatpush1.bf16.xpose.msra.mxu0 %v1213
        %1227 = vmatprep.subr.bf16.mxu0 0
        %1228 = vmatpush1.bf16.xpose.msra.mxu0 %v1210
        %1229 = vmatprep.subr.bf16.mxu0 0
        %1230 = vmatpush1.bf16.xpose.msra.mxu0 %v1207
        %1231 = vmatprep.subr.bf16.mxu0 0
        %1232 = vmatpush1.bf16.xpose.msra.mxu0 %v1204
        %1233 = vmatprep.subr.bf16.mxu0 0
        %1234 = vmatpush1.bf16.xpose.msra.mxu0 %v1201
        %1235 = vmatprep.subr.bf16.mxu0 0
        %1236 = vmatpush1.bf16.xpose.msra.mxu0 %v1198
        %1237 = vmatprep.subr.bf16.mxu0 0
        %1238 = vmatpush2.bf16.xpose.msra.mxu0 0
        %1239 = vmatprep.subr.bf16.mxu0 0
        %1240 = vmatpush2.bf16.xpose.msra.mxu0 0
        %1241 = vmatprep.subr.bf16.mxu0 0
        %1242 = vmatpush2.bf16.xpose.msra.mxu0 0
        %1243 = vmatprep.subr.bf16.mxu0 0
        %1244 = vmatpush2.bf16.xpose.msra.mxu0 0
        %1245 = vmatprep.subr.bf16.mxu0 0
        %1246 = vmatpush2.bf16.xpose.msra.mxu0 0
        %1247 = vmatprep.subr.bf16.mxu0 0
        %1248 = vmatpush2.bf16.xpose.msra.mxu0 0
        %1249 = vmatprep.subr.bf16.mxu0 0
        %1250 = vmatpush2.bf16.xpose.msra.mxu0 0
        %1251 = vmatprep.subr.bf16.mxu0 0
        %1252 = vmatpush2.bf16.xpose.msra.mxu0 0
        %1253 = vmatprep.mubr.bf16.mxu0 0
        %1254 = vmatmul.mubr.bf16.gmra.mxu0 %v1195
        %v1255 = vpop.f32.mrf.mxu0
        %v1256 = vadd.f32 0.0, %v1255
        %v1257 = vpop.f32.mrf.mxu0
        %v1258 = vpop.f32.mrf.mxu0
        %v1259 = vpop.f32.mrf.mxu0
        %1260 = vdwg.mxu0
        %s1261 = sand.u32 %s1040, 255
        %s1263 = sor.u32 256, %s1261
        %1264 = vrot.lane.b32.xlu0 %v1256, %s1263
        %v1265 = vpop.permute.xlu0 %1264
        %1267 = vrot.lane.b32.xlu0 %v883, 120
        %v1268 = vpop.permute.xlu0 %1267
        %1269 = vrot.lane.b32.xlu0 %v1050, 120
        %v1270 = vpop.permute.xlu0 %1269
        %v1272 = vsel %vm970, %v1268, 0
        %v1275 = vsel %vm970, %v1270, 0
        %1277 = vmatprep.subr.bf16.mxu0 0
        %1278 = vmatpush1.bf16.xpose.msra.mxu0 0
        %1279 = vmatprep.subr.bf16.mxu0 0
        %1280 = vmatpush1.bf16.xpose.msra.mxu0 0
        %1281 = vmatprep.subr.bf16.mxu0 0
        %1282 = vmatpush1.bf16.xpose.msra.mxu0 0
        %1283 = vmatprep.subr.bf16.mxu0 0
        %1284 = vmatpush1.bf16.xpose.msra.mxu0 0
        %1285 = vmatprep.subr.bf16.mxu0 0
        %1286 = vmatpush1.bf16.xpose.msra.mxu0 0
        %1287 = vmatprep.subr.bf16.mxu0 0
        %1288 = vmatpush1.bf16.xpose.msra.mxu0 0
        %1289 = vmatprep.subr.bf16.mxu0 0
        %1290 = vmatpush1.bf16.xpose.msra.mxu0 0
        %1291 = vmatprep.subr.bf16.mxu0 0
        %1292 = vmatpush1.bf16.xpose.msra.mxu0 %v1275
        %1293 = vmatprep.subr.bf16.mxu0 0
        %1294 = vmatpush2.bf16.xpose.msra.mxu0 0
        %1295 = vmatprep.subr.bf16.mxu0 0
        %1296 = vmatpush2.bf16.xpose.msra.mxu0 0
        %1297 = vmatprep.subr.bf16.mxu0 0
        %1298 = vmatpush2.bf16.xpose.msra.mxu0 0
        %1299 = vmatprep.subr.bf16.mxu0 0
        %1300 = vmatpush2.bf16.xpose.msra.mxu0 0
        %1301 = vmatprep.subr.bf16.mxu0 0
        %1302 = vmatpush2.bf16.xpose.msra.mxu0 0
        %1303 = vmatprep.subr.bf16.mxu0 0
        %1304 = vmatpush2.bf16.xpose.msra.mxu0 0
        %1305 = vmatprep.subr.bf16.mxu0 0
        %1306 = vmatpush2.bf16.xpose.msra.mxu0 0
        %1307 = vmatprep.subr.bf16.mxu0 0
        %1308 = vmatpush2.bf16.xpose.msra.mxu0 0
        %1309 = vmatprep.mubr.bf16.mxu0 0
        %1310 = vmatmul.mubr.bf16.gmra.mxu0 %v1272
        %v1311 = vpop.f32.mrf.mxu0
        %v1312 = vadd.f32 %v1265, %v1311
        %v1313 = vpop.f32.mrf.mxu0
        %v1314 = vpop.f32.mrf.mxu0
        %v1315 = vpop.f32.mrf.mxu0
        %1316 = vdwg.mxu0
        %v1317 = vadd.f32 %v1312, %v1101
        %v1318 = vsel %vm1104, %v1317, -inf
        %1319 = vmax.xlane.f32.xlu0 %v1318
        %v1320 = vpop.xlane.xlu0 %1319
        %v1321 = vsub.f32 %v1317, %v1320
        %v1322 = vmul.f32 %v1321, 1.442695
        %v1323 = vpow.pop %v1322
        %v1324 = vsel %vm1104, %v1323, 0.0
        %1325 = vadd.xlane.f32.xlu0 %v1324
        %v1326 = vpop.xlane.xlu0 %1325
        %v1327 = vrcp.pop %v1326
        %v1328 = vmul.f32 %v1323, %v1327
        %v1329 = vmul.f32 %v1328, %v1120
        %v1330 = vpack.c.bf16 %v1329, %v1329
        %1331 = vrot.lane.b32.xlu0 %v1128, 120
        %v1332 = vpop.permute.xlu0 %1331
        %v1335 = vsel %vm1104, %v1330, 0
        %1337 = vmatprep.subr.bf16.mxu0 0
        %1338 = vmatpush1.bf16.msra.mxu0 0
        %1339 = vmatprep.subr.bf16.mxu0 0
        %1340 = vmatpush1.bf16.msra.mxu0 0
        %1341 = vmatprep.subr.bf16.mxu0 0
        %1342 = vmatpush1.bf16.msra.mxu0 0
        %1343 = vmatprep.subr.bf16.mxu0 0
        %1344 = vmatpush1.bf16.msra.mxu0 0
        %1345 = vmatprep.subr.bf16.mxu0 0
        %1346 = vmatpush1.bf16.msra.mxu0 0
        %1347 = vmatprep.subr.bf16.mxu0 0
        %1348 = vmatpush1.bf16.msra.mxu0 0
        %1349 = vmatprep.subr.bf16.mxu0 0
        %1350 = vmatpush1.bf16.msra.mxu0 0
        %1351 = vmatprep.subr.bf16.mxu0 0
        %1352 = vmatpush1.bf16.msra.mxu0 %v1332
        %1353 = vmatprep.subr.bf16.mxu0 0
        %1354 = vmatpush2.bf16.msra.mxu0 0
        %1355 = vmatprep.subr.bf16.mxu0 0
        %1356 = vmatpush2.bf16.msra.mxu0 0
        %1357 = vmatprep.subr.bf16.mxu0 0
        %1358 = vmatpush2.bf16.msra.mxu0 0
        %1359 = vmatprep.subr.bf16.mxu0 0
        %1360 = vmatpush2.bf16.msra.mxu0 0
        %1361 = vmatprep.subr.bf16.mxu0 0
        %1362 = vmatpush2.bf16.msra.mxu0 0
        %1363 = vmatprep.subr.bf16.mxu0 0
        %1364 = vmatpush2.bf16.msra.mxu0 0
        %1365 = vmatprep.subr.bf16.mxu0 0
        %1366 = vmatpush2.bf16.msra.mxu0 0
        %1367 = vmatprep.subr.bf16.mxu0 0
        %1368 = vmatpush2.bf16.msra.mxu0 0
        %1369 = vmatprep.mubr.bf16.mxu0 0
        %1370 = vmatmul.mubr.bf16.gmra.mxu0 %v1335
        %v1371 = vpop.f32.mrf.mxu0
        %v1372 = vadd.f32 0.0, %v1371
        %v1373 = vpop.f32.mrf.mxu0
        %v1374 = vpop.f32.mrf.mxu0
        %v1375 = vpop.f32.mrf.mxu0
        %1376 = vdwg.mxu0
        %v1377 = vpack.c.bf16 %v1372, %v1372
        %v1378 = vld [vmem:[#allocation10 + $0x4] sm:$0xf]
        %v1380 = vsel %vm970, %v1377, 0
        %vm1382 = vcmask 1043456
        %v1384 = vsel %vm1382, %v1378, 0
        %1386 = vmatprep.subr.bf16.mxu0 0
        %1387 = vmatpush1.bf16.msra.mxu0 0
        %1388 = vmatprep.subr.bf16.mxu0 0
        %1389 = vmatpush1.bf16.msra.mxu0 0
        %1390 = vmatprep.subr.bf16.mxu0 0
        %1391 = vmatpush1.bf16.msra.mxu0 0
        %1392 = vmatprep.subr.bf16.mxu0 0
        %1393 = vmatpush1.bf16.msra.mxu0 0
        %1394 = vmatprep.subr.bf16.mxu0 0
        %1395 = vmatpush1.bf16.msra.mxu0 0
        %1396 = vmatprep.subr.bf16.mxu0 0
        %1397 = vmatpush1.bf16.msra.mxu0 0
        %1398 = vmatprep.subr.bf16.mxu0 0
        %1399 = vmatpush1.bf16.msra.mxu0 0
        %1400 = vmatprep.subr.bf16.mxu0 0
        %1401 = vmatpush1.bf16.msra.mxu0 %v1384
        %1402 = vmatprep.subr.bf16.mxu0 0
        %1403 = vmatpush2.bf16.msra.mxu0 0
        %1404 = vmatprep.subr.bf16.mxu0 0
        %1405 = vmatpush2.bf16.msra.mxu0 0
        %1406 = vmatprep.subr.bf16.mxu0 0
        %1407 = vmatpush2.bf16.msra.mxu0 0
        %1408 = vmatprep.subr.bf16.mxu0 0
        %1409 = vmatpush2.bf16.msra.mxu0 0
        %1410 = vmatprep.subr.bf16.mxu0 0
        %1411 = vmatpush2.bf16.msra.mxu0 0
        %1412 = vmatprep.subr.bf16.mxu0 0
        %1413 = vmatpush2.bf16.msra.mxu0 0
        %1414 = vmatprep.subr.bf16.mxu0 0
        %1415 = vmatpush2.bf16.msra.mxu0 0
        %1416 = vmatprep.subr.bf16.mxu0 0
        %1417 = vmatpush2.bf16.msra.mxu0 0
        %1418 = vmatprep.mubr.bf16.mxu0 0
        %1419 = vmatmul.mubr.bf16.gmra.mxu0 %v1380
        %v1420 = vpop.f32.mrf.mxu0
        %v1421 = vadd.f32 0.0, %v1420
        %v1422 = vpop.f32.mrf.mxu0
        %v1423 = vpop.f32.mrf.mxu0
        %v1424 = vpop.f32.mrf.mxu0
        %1425 = vdwg.mxu0
        %v1427 = vsel %vm970, %v1173, 0
        %v1430 = vsel %vm1382, %v1174, 0
        %1432 = vmatprep.subr.bf16.mxu0 0
        %1433 = vmatpush1.bf16.msra.mxu0 0
        %1434 = vmatprep.subr.bf16.mxu0 0
        %1435 = vmatpush1.bf16.msra.mxu0 0
        %1436 = vmatprep.subr.bf16.mxu0 0
        %1437 = vmatpush1.bf16.msra.mxu0 0
        %1438 = vmatprep.subr.bf16.mxu0 0
        %1439 = vmatpush1.bf16.msra.mxu0 0
        %1440 = vmatprep.subr.bf16.mxu0 0
        %1441 = vmatpush1.bf16.msra.mxu0 0
        %1442 = vmatprep.subr.bf16.mxu0 0
        %1443 = vmatpush1.bf16.msra.mxu0 0
        %1444 = vmatprep.subr.bf16.mxu0 0
        %1445 = vmatpush1.bf16.msra.mxu0 0
        %1446 = vmatprep.subr.bf16.mxu0 0
        %1447 = vmatpush1.bf16.msra.mxu0 %v1430
        %1448 = vmatprep.subr.bf16.mxu0 0
        %1449 = vmatpush2.bf16.msra.mxu0 0
        %1450 = vmatprep.subr.bf16.mxu0 0
        %1451 = vmatpush2.bf16.msra.mxu0 0
        %1452 = vmatprep.subr.bf16.mxu0 0
        %1453 = vmatpush2.bf16.msra.mxu0 0
        %1454 = vmatprep.subr.bf16.mxu0 0
        %1455 = vmatpush2.bf16.msra.mxu0 0
        %1456 = vmatprep.subr.bf16.mxu0 0
        %1457 = vmatpush2.bf16.msra.mxu0 0
        %1458 = vmatprep.subr.bf16.mxu0 0
        %1459 = vmatpush2.bf16.msra.mxu0 0
        %1460 = vmatprep.subr.bf16.mxu0 0
        %1461 = vmatpush2.bf16.msra.mxu0 0
        %1462 = vmatprep.subr.bf16.mxu0 0
        %1463 = vmatpush2.bf16.msra.mxu0 0
        %1464 = vmatprep.mubr.bf16.mxu0 0
        %1465 = vmatmul.mubr.bf16.gmra.mxu0 %v1427
        %v1466 = vpop.f32.mrf.mxu0
        %v1467 = vadd.f32 %v1421, %v1466
        %v1468 = vpop.f32.mrf.mxu0
        %v1469 = vpop.f32.mrf.mxu0
        %v1470 = vpop.f32.mrf.mxu0
        %1471 = vdwg.mxu0
        %1472 = vrot.lane.b32.xlu0 %v892, 112
        %v1473 = vpop.permute.xlu0 %1472
        %1474 = vrot.lane.b32.xlu0 %v962, 112
        %v1475 = vpop.permute.xlu0 %1474
        %1476 = vrot.lane.b32.xlu0 %v963, 112
        %v1477 = vpop.permute.xlu0 %1476
        %1478 = vrot.lane.b32.xlu0 %v964, 112
        %v1479 = vpop.permute.xlu0 %1478
        %1480 = vrot.lane.b32.xlu0 %v965, 112
        %v1481 = vpop.permute.xlu0 %1480
        %1482 = vrot.lane.b32.xlu0 %v966, 112
        %v1483 = vpop.permute.xlu0 %1482
        %1484 = vrot.lane.b32.xlu0 %v967, 112
        %v1485 = vpop.permute.xlu0 %1484
        %1486 = vrot.lane.b32.xlu0 %v968, 112
        %v1487 = vpop.permute.xlu0 %1486
        %1488 = vrot.lane.b32.xlu0 %v969, 112
        %v1489 = vpop.permute.xlu0 %1488
        %v1491 = vsel %vm970, %v1473, 0
        %v1494 = vsel %vm970, %v1475, 0
        %v1497 = vsel %vm970, %v1477, 0
        %v1500 = vsel %vm970, %v1479, 0
        %v1503 = vsel %vm970, %v1481, 0
        %v1506 = vsel %vm970, %v1483, 0
        %v1509 = vsel %vm970, %v1485, 0
        %v1512 = vsel %vm970, %v1487, 0
        %v1515 = vsel %vm970, %v1489, 0
        %1517 = vmatprep.subr.bf16.mxu0 0
        %1518 = vmatpush1.bf16.xpose.msra.mxu0 %v1515
        %1519 = vmatprep.subr.bf16.mxu0 0
        %1520 = vmatpush1.bf16.xpose.msra.mxu0 %v1512
        %1521 = vmatprep.subr.bf16.mxu0 0
        %1522 = vmatpush1.bf16.xpose.msra.mxu0 %v1509
        %1523 = vmatprep.subr.bf16.mxu0 0
        %1524 = vmatpush1.bf16.xpose.msra.mxu0 %v1506
        %1525 = vmatprep.subr.bf16.mxu0 0
        %1526 = vmatpush1.bf16.xpose.msra.mxu0 %v1503
        %1527 = vmatprep.subr.bf16.mxu0 0
        %1528 = vmatpush1.bf16.xpose.msra.mxu0 %v1500
        %1529 = vmatprep.subr.bf16.mxu0 0
        %1530 = vmatpush1.bf16.xpose.msra.mxu0 %v1497
        %1531 = vmatprep.subr.bf16.mxu0 0
        %1532 = vmatpush1.bf16.xpose.msra.mxu0 %v1494
        %1533 = vmatprep.subr.bf16.mxu0 0
        %1534 = vmatpush2.bf16.xpose.msra.mxu0 0
        %1535 = vmatprep.subr.bf16.mxu0 0
        %1536 = vmatpush2.bf16.xpose.msra.mxu0 0
        %1537 = vmatprep.subr.bf16.mxu0 0
        %1538 = vmatpush2.bf16.xpose.msra.mxu0 0
        %1539 = vmatprep.subr.bf16.mxu0 0
        %1540 = vmatpush2.bf16.xpose.msra.mxu0 0
        %1541 = vmatprep.subr.bf16.mxu0 0
        %1542 = vmatpush2.bf16.xpose.msra.mxu0 0
        %1543 = vmatprep.subr.bf16.mxu0 0
        %1544 = vmatpush2.bf16.xpose.msra.mxu0 0
        %1545 = vmatprep.subr.bf16.mxu0 0
        %1546 = vmatpush2.bf16.xpose.msra.mxu0 0
        %1547 = vmatprep.subr.bf16.mxu0 0
        %1548 = vmatpush2.bf16.xpose.msra.mxu0 0
        %1549 = vmatprep.mubr.bf16.mxu0 0
        %1550 = vmatmul.mubr.bf16.gmra.mxu0 %v1491
        %v1551 = vpop.f32.mrf.mxu0
        %v1552 = vadd.f32 0.0, %v1551
        %v1553 = vpop.f32.mrf.mxu0
        %v1554 = vpop.f32.mrf.mxu0
        %v1555 = vpop.f32.mrf.mxu0
        %1556 = vdwg.mxu0
        %s1557 = sand.u32 %s1040, 255
        %s1559 = sor.u32 256, %s1557
        %1560 = vrot.lane.b32.xlu0 %v1552, %s1559
        %v1561 = vpop.permute.xlu0 %1560
        %1562 = vrot.lane.b32.xlu0 %v883, 112
        %v1563 = vpop.permute.xlu0 %1562
        %1564 = vrot.lane.b32.xlu0 %v1050, 112
        %v1565 = vpop.permute.xlu0 %1564
        %v1567 = vsel %vm970, %v1563, 0
        %v1570 = vsel %vm970, %v1565, 0
        %1572 = vmatprep.subr.bf16.mxu0 0
        %1573 = vmatpush1.bf16.xpose.msra.mxu0 0
        %1574 = vmatprep.subr.bf16.mxu0 0
        %1575 = vmatpush1.bf16.xpose.msra.mxu0 0
        %1576 = vmatprep.subr.bf16.mxu0 0
        %1577 = vmatpush1.bf16.xpose.msra.mxu0 0
        %1578 = vmatprep.subr.bf16.mxu0 0
        %1579 = vmatpush1.bf16.xpose.msra.mxu0 0
        %1580 = vmatprep.subr.bf16.mxu0 0
        %1581 = vmatpush1.bf16.xpose.msra.mxu0 0
        %1582 = vmatprep.subr.bf16.mxu0 0
        %1583 = vmatpush1.bf16.xpose.msra.mxu0 0
        %1584 = vmatprep.subr.bf16.mxu0 0
        %1585 = vmatpush1.bf16.xpose.msra.mxu0 0
        %1586 = vmatprep.subr.bf16.mxu0 0
        %1587 = vmatpush1.bf16.xpose.msra.mxu0 %v1570
        %1588 = vmatprep.subr.bf16.mxu0 0
        %1589 = vmatpush2.bf16.xpose.msra.mxu0 0
        %1590 = vmatprep.subr.bf16.mxu0 0
        %1591 = vmatpush2.bf16.xpose.msra.mxu0 0
        %1592 = vmatprep.subr.bf16.mxu0 0
        %1593 = vmatpush2.bf16.xpose.msra.mxu0 0
        %1594 = vmatprep.subr.bf16.mxu0 0
        %1595 = vmatpush2.bf16.xpose.msra.mxu0 0
        %1596 = vmatprep.subr.bf16.mxu0 0
        %1597 = vmatpush2.bf16.xpose.msra.mxu0 0
        %1598 = vmatprep.subr.bf16.mxu0 0
        %1599 = vmatpush2.bf16.xpose.msra.mxu0 0
        %1600 = vmatprep.subr.bf16.mxu0 0
        %1601 = vmatpush2.bf16.xpose.msra.mxu0 0
        %1602 = vmatprep.subr.bf16.mxu0 0
        %1603 = vmatpush2.bf16.xpose.msra.mxu0 0
        %1604 = vmatprep.mubr.bf16.mxu0 0
        %1605 = vmatmul.mubr.bf16.gmra.mxu0 %v1567
        %v1606 = vpop.f32.mrf.mxu0
        %v1607 = vadd.f32 %v1561, %v1606
        %v1608 = vpop.f32.mrf.mxu0
        %v1609 = vpop.f32.mrf.mxu0
        %v1610 = vpop.f32.mrf.mxu0
        %1611 = vdwg.mxu0
        %v1612 = vadd.f32 %v1607, %v1101
        %v1613 = vsel %vm1104, %v1612, -inf
        %1614 = vmax.xlane.f32.xlu0 %v1613
        %v1615 = vpop.xlane.xlu0 %1614
        %v1616 = vsub.f32 %v1612, %v1615
        %v1617 = vmul.f32 %v1616, 1.442695
        %v1618 = vpow.pop %v1617
        %v1619 = vsel %vm1104, %v1618, 0.0
        %1620 = vadd.xlane.f32.xlu0 %v1619
        %v1621 = vpop.xlane.xlu0 %1620
        %v1622 = vrcp.pop %v1621
        %v1623 = vmul.f32 %v1618, %v1622
        %v1624 = vmul.f32 %v1623, %v1120
        %v1625 = vpack.c.bf16 %v1624, %v1624
        %1626 = vrot.lane.b32.xlu0 %v1128, 112
        %v1627 = vpop.permute.xlu0 %1626
        %v1630 = vsel %vm1104, %v1625, 0
        %1632 = vmatprep.subr.bf16.mxu0 0
        %1633 = vmatpush1.bf16.msra.mxu0 0
        %1634 = vmatprep.subr.bf16.mxu0 0
        %1635 = vmatpush1.bf16.msra.mxu0 0
        %1636 = vmatprep.subr.bf16.mxu0 0
        %1637 = vmatpush1.bf16.msra.mxu0 0
        %1638 = vmatprep.subr.bf16.mxu0 0
        %1639 = vmatpush1.bf16.msra.mxu0 0
        %1640 = vmatprep.subr.bf16.mxu0 0
        %1641 = vmatpush1.bf16.msra.mxu0 0
        %1642 = vmatprep.subr.bf16.mxu0 0
        %1643 = vmatpush1.bf16.msra.mxu0 0
        %1644 = vmatprep.subr.bf16.mxu0 0
        %1645 = vmatpush1.bf16.msra.mxu0 0
        %1646 = vmatprep.subr.bf16.mxu0 0
        %1647 = vmatpush1.bf16.msra.mxu0 %v1627
        %1648 = vmatprep.subr.bf16.mxu0 0
        %1649 = vmatpush2.bf16.msra.mxu0 0
        %1650 = vmatprep.subr.bf16.mxu0 0
        %1651 = vmatpush2.bf16.msra.mxu0 0
        %1652 = vmatprep.subr.bf16.mxu0 0
        %1653 = vmatpush2.bf16.msra.mxu0 0
        %1654 = vmatprep.subr.bf16.mxu0 0
        %1655 = vmatpush2.bf16.msra.mxu0 0
        %1656 = vmatprep.subr.bf16.mxu0 0
        %1657 = vmatpush2.bf16.msra.mxu0 0
        %1658 = vmatprep.subr.bf16.mxu0 0
        %1659 = vmatpush2.bf16.msra.mxu0 0
        %1660 = vmatprep.subr.bf16.mxu0 0
        %1661 = vmatpush2.bf16.msra.mxu0 0
        %1662 = vmatprep.subr.bf16.mxu0 0
        %1663 = vmatpush2.bf16.msra.mxu0 0
        %1664 = vmatprep.mubr.bf16.mxu0 0
        %1665 = vmatmul.mubr.bf16.gmra.mxu0 %v1630
        %v1666 = vpop.f32.mrf.mxu0
        %v1667 = vadd.f32 0.0, %v1666
        %v1668 = vpop.f32.mrf.mxu0
        %v1669 = vpop.f32.mrf.mxu0
        %v1670 = vpop.f32.mrf.mxu0
        %1671 = vdwg.mxu0
        %v1672 = vpack.c.bf16 %v1667, %v1667
        %v1673 = vld [vmem:[#allocation10 + $0x8] sm:$0xf]
        %v1675 = vsel %vm970, %v1672, 0
        %v1678 = vsel %vm1382, %v1673, 0
        %1680 = vmatprep.subr.bf16.mxu0 0
        %1681 = vmatpush1.bf16.msra.mxu0 0
        %1682 = vmatprep.subr.bf16.mxu0 0
        %1683 = vmatpush1.bf16.msra.mxu0 0
        %1684 = vmatprep.subr.bf16.mxu0 0
        %1685 = vmatpush1.bf16.msra.mxu0 0
        %1686 = vmatprep.subr.bf16.mxu0 0
        %1687 = vmatpush1.bf16.msra.mxu0 0
        %1688 = vmatprep.subr.bf16.mxu0 0
        %1689 = vmatpush1.bf16.msra.mxu0 0
        %1690 = vmatprep.subr.bf16.mxu0 0
        %1691 = vmatpush1.bf16.msra.mxu0 0
        %1692 = vmatprep.subr.bf16.mxu0 0
        %1693 = vmatpush1.bf16.msra.mxu0 0
        %1694 = vmatprep.subr.bf16.mxu0 0
        %1695 = vmatpush1.bf16.msra.mxu0 %v1678
        %1696 = vmatprep.subr.bf16.mxu0 0
        %1697 = vmatpush2.bf16.msra.mxu0 0
        %1698 = vmatprep.subr.bf16.mxu0 0
        %1699 = vmatpush2.bf16.msra.mxu0 0
        %1700 = vmatprep.subr.bf16.mxu0 0
        %1701 = vmatpush2.bf16.msra.mxu0 0
        %1702 = vmatprep.subr.bf16.mxu0 0
        %1703 = vmatpush2.bf16.msra.mxu0 0
        %1704 = vmatprep.subr.bf16.mxu0 0
        %1705 = vmatpush2.bf16.msra.mxu0 0
        %1706 = vmatprep.subr.bf16.mxu0 0
        %1707 = vmatpush2.bf16.msra.mxu0 0
        %1708 = vmatprep.subr.bf16.mxu0 0
        %1709 = vmatpush2.bf16.msra.mxu0 0
        %1710 = vmatprep.subr.bf16.mxu0 0
        %1711 = vmatpush2.bf16.msra.mxu0 0
        %1712 = vmatprep.mubr.bf16.mxu0 0
        %1713 = vmatmul.mubr.bf16.gmra.mxu0 %v1675
        %v1714 = vpop.f32.mrf.mxu0
        %v1715 = vadd.f32 0.0, %v1714
        %v1716 = vpop.f32.mrf.mxu0
        %v1717 = vpop.f32.mrf.mxu0
        %v1718 = vpop.f32.mrf.mxu0
        %1719 = vdwg.mxu0
        %v1720 = vadd.f32 %v1467, %v1715
        %1721 = vrot.lane.b32.xlu0 %v892, 104
        %v1722 = vpop.permute.xlu0 %1721
        %1723 = vrot.lane.b32.xlu0 %v962, 104
        %v1724 = vpop.permute.xlu0 %1723
        %1725 = vrot.lane.b32.xlu0 %v963, 104
        %v1726 = vpop.permute.xlu0 %1725
        %1727 = vrot.lane.b32.xlu0 %v964, 104
        %v1728 = vpop.permute.xlu0 %1727
        %1729 = vrot.lane.b32.xlu0 %v965, 104
        %v1730 = vpop.permute.xlu0 %1729
        %1731 = vrot.lane.b32.xlu0 %v966, 104
        %v1732 = vpop.permute.xlu0 %1731
        %1733 = vrot.lane.b32.xlu0 %v967, 104
        %v1734 = vpop.permute.xlu0 %1733
        %1735 = vrot.lane.b32.xlu0 %v968, 104
        %v1736 = vpop.permute.xlu0 %1735
        %1737 = vrot.lane.b32.xlu0 %v969, 104
        %v1738 = vpop.permute.xlu0 %1737
        %v1740 = vsel %vm970, %v1722, 0
        %v1743 = vsel %vm970, %v1724, 0
        %v1746 = vsel %vm970, %v1726, 0
        %v1749 = vsel %vm970, %v1728, 0
        %v1752 = vsel %vm970, %v1730, 0
        %v1755 = vsel %vm970, %v1732, 0
        %v1758 = vsel %vm970, %v1734, 0
        %v1761 = vsel %vm970, %v1736, 0
        %v1764 = vsel %vm970, %v1738, 0
        %1766 = vmatprep.subr.bf16.mxu0 0
        %1767 = vmatpush1.bf16.xpose.msra.mxu0 %v1764
        %1768 = vmatprep.subr.bf16.mxu0 0
        %1769 = vmatpush1.bf16.xpose.msra.mxu0 %v1761
        %1770 = vmatprep.subr.bf16.mxu0 0
        %1771 = vmatpush1.bf16.xpose.msra.mxu0 %v1758
        %1772 = vmatprep.subr.bf16.mxu0 0
        %1773 = vmatpush1.bf16.xpose.msra.mxu0 %v1755
        %1774 = vmatprep.subr.bf16.mxu0 0
        %1775 = vmatpush1.bf16.xpose.msra.mxu0 %v1752
        %1776 = vmatprep.subr.bf16.mxu0 0
        %1777 = vmatpush1.bf16.xpose.msra.mxu0 %v1749
        %1778 = vmatprep.subr.bf16.mxu0 0
        %1779 = vmatpush1.bf16.xpose.msra.mxu0 %v1746
        %1780 = vmatprep.subr.bf16.mxu0 0
        %1781 = vmatpush1.bf16.xpose.msra.mxu0 %v1743
        %1782 = vmatprep.subr.bf16.mxu0 0
        %1783 = vmatpush2.bf16.xpose.msra.mxu0 0
        %1784 = vmatprep.subr.bf16.mxu0 0
        %1785 = vmatpush2.bf16.xpose.msra.mxu0 0
        %1786 = vmatprep.subr.bf16.mxu0 0
        %1787 = vmatpush2.bf16.xpose.msra.mxu0 0
        %1788 = vmatprep.subr.bf16.mxu0 0
        %1789 = vmatpush2.bf16.xpose.msra.mxu0 0
        %1790 = vmatprep.subr.bf16.mxu0 0
        %1791 = vmatpush2.bf16.xpose.msra.mxu0 0
        %1792 = vmatprep.subr.bf16.mxu0 0
        %1793 = vmatpush2.bf16.xpose.msra.mxu0 0
        %1794 = vmatprep.subr.bf16.mxu0 0
        %1795 = vmatpush2.bf16.xpose.msra.mxu0 0
        %1796 = vmatprep.subr.bf16.mxu0 0
        %1797 = vmatpush2.bf16.xpose.msra.mxu0 0
        %1798 = vmatprep.mubr.bf16.mxu0 0
        %1799 = vmatmul.mubr.bf16.gmra.mxu0 %v1740
        %v1800 = vpop.f32.mrf.mxu0
        %v1801 = vadd.f32 0.0, %v1800
        %v1802 = vpop.f32.mrf.mxu0
        %v1803 = vpop.f32.mrf.mxu0
        %v1804 = vpop.f32.mrf.mxu0
        %1805 = vdwg.mxu0
        %s1806 = sand.u32 %s1040, 255
        %s1808 = sor.u32 256, %s1806
        %1809 = vrot.lane.b32.xlu0 %v1801, %s1808
        %v1810 = vpop.permute.xlu0 %1809
        %1811 = vrot.lane.b32.xlu0 %v883, 104
        %v1812 = vpop.permute.xlu0 %1811
        %1813 = vrot.lane.b32.xlu0 %v1050, 104
        %v1814 = vpop.permute.xlu0 %1813
        %v1816 = vsel %vm970, %v1812, 0
        %v1819 = vsel %vm970, %v1814, 0
        %1821 = vmatprep.subr.bf16.mxu0 0
        %1822 = vmatpush1.bf16.xpose.msra.mxu0 0
        %1823 = vmatprep.subr.bf16.mxu0 0
        %1824 = vmatpush1.bf16.xpose.msra.mxu0 0
        %1825 = vmatprep.subr.bf16.mxu0 0
        %1826 = vmatpush1.bf16.xpose.msra.mxu0 0
        %1827 = vmatprep.subr.bf16.mxu0 0
        %1828 = vmatpush1.bf16.xpose.msra.mxu0 0
        %1829 = vmatprep.subr.bf16.mxu0 0
        %1830 = vmatpush1.bf16.xpose.msra.mxu0 0
        %1831 = vmatprep.subr.bf16.mxu0 0
        %1832 = vmatpush1.bf16.xpose.msra.mxu0 0
        %1833 = vmatprep.subr.bf16.mxu0 0
        %1834 = vmatpush1.bf16.xpose.msra.mxu0 0
        %1835 = vmatprep.subr.bf16.mxu0 0
        %1836 = vmatpush1.bf16.xpose.msra.mxu0 %v1819
        %1837 = vmatprep.subr.bf16.mxu0 0
        %1838 = vmatpush2.bf16.xpose.msra.mxu0 0
        %1839 = vmatprep.subr.bf16.mxu0 0
        %1840 = vmatpush2.bf16.xpose.msra.mxu0 0
        %1841 = vmatprep.subr.bf16.mxu0 0
        %1842 = vmatpush2.bf16.xpose.msra.mxu0 0
        %1843 = vmatprep.subr.bf16.mxu0 0
        %1844 = vmatpush2.bf16.xpose.msra.mxu0 0
        %1845 = vmatprep.subr.bf16.mxu0 0
        %1846 = vmatpush2.bf16.xpose.msra.mxu0 0
        %1847 = vmatprep.subr.bf16.mxu0 0
        %1848 = vmatpush2.bf16.xpose.msra.mxu0 0
        %1849 = vmatprep.subr.bf16.mxu0 0
        %1850 = vmatpush2.bf16.xpose.msra.mxu0 0
        %1851 = vmatprep.subr.bf16.mxu0 0
        %1852 = vmatpush2.bf16.xpose.msra.mxu0 0
        %1853 = vmatprep.mubr.bf16.mxu0 0
        %1854 = vmatmul.mubr.bf16.gmra.mxu0 %v1816
        %v1855 = vpop.f32.mrf.mxu0
        %v1856 = vadd.f32 %v1810, %v1855
        %v1857 = vpop.f32.mrf.mxu0
        %v1858 = vpop.f32.mrf.mxu0
        %v1859 = vpop.f32.mrf.mxu0
        %1860 = vdwg.mxu0
        %v1861 = vadd.f32 %v1856, %v1101
        %v1862 = vsel %vm1104, %v1861, -inf
        %1863 = vmax.xlane.f32.xlu0 %v1862
        %v1864 = vpop.xlane.xlu0 %1863
        %v1865 = vsub.f32 %v1861, %v1864
        %v1866 = vmul.f32 %v1865, 1.442695
        %v1867 = vpow.pop %v1866
        %v1868 = vsel %vm1104, %v1867, 0.0
        %1869 = vadd.xlane.f32.xlu0 %v1868
        %v1870 = vpop.xlane.xlu0 %1869
        %v1871 = vrcp.pop %v1870
        %v1872 = vmul.f32 %v1867, %v1871
        %v1873 = vmul.f32 %v1872, %v1120
        %v1874 = vpack.c.bf16 %v1873, %v1873
        %1875 = vrot.lane.b32.xlu0 %v1128, 104
        %v1876 = vpop.permute.xlu0 %1875
        %v1879 = vsel %vm1104, %v1874, 0
        %1881 = vmatprep.subr.bf16.mxu0 0
        %1882 = vmatpush1.bf16.msra.mxu0 0
        %1883 = vmatprep.subr.bf16.mxu0 0
        %1884 = vmatpush1.bf16.msra.mxu0 0
        %1885 = vmatprep.subr.bf16.mxu0 0
        %1886 = vmatpush1.bf16.msra.mxu0 0
        %1887 = vmatprep.subr.bf16.mxu0 0
        %1888 = vmatpush1.bf16.msra.mxu0 0
        %1889 = vmatprep.subr.bf16.mxu0 0
        %1890 = vmatpush1.bf16.msra.mxu0 0
        %1891 = vmatprep.subr.bf16.mxu0 0
        %1892 = vmatpush1.bf16.msra.mxu0 0
        %1893 = vmatprep.subr.bf16.mxu0 0
        %1894 = vmatpush1.bf16.msra.mxu0 0
        %1895 = vmatprep.subr.bf16.mxu0 0
        %1896 = vmatpush1.bf16.msra.mxu0 %v1876
        %1897 = vmatprep.subr.bf16.mxu0 0
        %1898 = vmatpush2.bf16.msra.mxu0 0
        %1899 = vmatprep.subr.bf16.mxu0 0
        %1900 = vmatpush2.bf16.msra.mxu0 0
        %1901 = vmatprep.subr.bf16.mxu0 0
        %1902 = vmatpush2.bf16.msra.mxu0 0
        %1903 = vmatprep.subr.bf16.mxu0 0
        %1904 = vmatpush2.bf16.msra.mxu0 0
        %1905 = vmatprep.subr.bf16.mxu0 0
        %1906 = vmatpush2.bf16.msra.mxu0 0
        %1907 = vmatprep.subr.bf16.mxu0 0
        %1908 = vmatpush2.bf16.msra.mxu0 0
        %1909 = vmatprep.subr.bf16.mxu0 0
        %1910 = vmatpush2.bf16.msra.mxu0 0
        %1911 = vmatprep.subr.bf16.mxu0 0
        %1912 = vmatpush2.bf16.msra.mxu0 0
        %1913 = vmatprep.mubr.bf16.mxu0 0
        %1914 = vmatmul.mubr.bf16.gmra.mxu0 %v1879
        %v1915 = vpop.f32.mrf.mxu0
        %v1916 = vadd.f32 0.0, %v1915
        %v1917 = vpop.f32.mrf.mxu0
        %v1918 = vpop.f32.mrf.mxu0
        %v1919 = vpop.f32.mrf.mxu0
        %1920 = vdwg.mxu0
        %v1921 = vpack.c.bf16 %v1916, %v1916
        %v1922 = vld [vmem:[#allocation10 + $0xc] sm:$0xf]
        %v1924 = vsel %vm970, %v1921, 0
        %v1927 = vsel %vm1382, %v1922, 0
        %1929 = vmatprep.subr.bf16.mxu0 0
        %1930 = vmatpush1.bf16.msra.mxu0 0
        %1931 = vmatprep.subr.bf16.mxu0 0
        %1932 = vmatpush1.bf16.msra.mxu0 0
        %1933 = vmatprep.subr.bf16.mxu0 0
        %1934 = vmatpush1.bf16.msra.mxu0 0
        %1935 = vmatprep.subr.bf16.mxu0 0
        %1936 = vmatpush1.bf16.msra.mxu0 0
        %1937 = vmatprep.subr.bf16.mxu0 0
        %1938 = vmatpush1.bf16.msra.mxu0 0
        %1939 = vmatprep.subr.bf16.mxu0 0
        %1940 = vmatpush1.bf16.msra.mxu0 0
        %1941 = vmatprep.subr.bf16.mxu0 0
        %1942 = vmatpush1.bf16.msra.mxu0 0
        %1943 = vmatprep.subr.bf16.mxu0 0
        %1944 = vmatpush1.bf16.msra.mxu0 %v1927
        %1945 = vmatprep.subr.bf16.mxu0 0
        %1946 = vmatpush2.bf16.msra.mxu0 0
        %1947 = vmatprep.subr.bf16.mxu0 0
        %1948 = vmatpush2.bf16.msra.mxu0 0
        %1949 = vmatprep.subr.bf16.mxu0 0
        %1950 = vmatpush2.bf16.msra.mxu0 0
        %1951 = vmatprep.subr.bf16.mxu0 0
        %1952 = vmatpush2.bf16.msra.mxu0 0
        %1953 = vmatprep.subr.bf16.mxu0 0
        %1954 = vmatpush2.bf16.msra.mxu0 0
        %1955 = vmatprep.subr.bf16.mxu0 0
        %1956 = vmatpush2.bf16.msra.mxu0 0
        %1957 = vmatprep.subr.bf16.mxu0 0
        %1958 = vmatpush2.bf16.msra.mxu0 0
        %1959 = vmatprep.subr.bf16.mxu0 0
        %1960 = vmatpush2.bf16.msra.mxu0 0
        %1961 = vmatprep.mubr.bf16.mxu0 0
        %1962 = vmatmul.mubr.bf16.gmra.mxu0 %v1924
        %v1963 = vpop.f32.mrf.mxu0
        %v1964 = vadd.f32 0.0, %v1963
        %v1965 = vpop.f32.mrf.mxu0
        %v1966 = vpop.f32.mrf.mxu0
        %v1967 = vpop.f32.mrf.mxu0
        %1968 = vdwg.mxu0
        %v1969 = vadd.f32 %v1720, %v1964
        %v1970 = vld [vmem:[%s12] sm:$0x1]
        %v1972 = vlaneseq
        %v1973 = vshrl.u32 %v1972, 7
        %v1974 = vsub.s32 0, %v1973
        %v1975 = vrot.slane %v1970, %v1974
        %v1977 = vadd.f32 %v1969, %v1975
        %1978 = vst.msk [vmem:[%s613] sm:$0xff] %vm831, %v1977
        %s1979 = sand.u32 %s393, 1
        %s1980 = scalar_lea.sflag [#allocation6], %s1979
        %s1981 = sand.u32 %s393, 1
        %s1982 = smul.addr %s1981, 8
        %s1983 = scalar_lea.vmem [#allocation12], %s1982
        // Predicated region
        $region101: #{tpu_custom_call.1} parent=79 // pred_check
          %p1984 = pneg %p403
        $region102: #{tpu_custom_call.1} parent=79 // pred_check_branch
          %1986 = sbr.rel (%p1984) target = $region104
        $region103: #{tpu_custom_call.1} parent=79 // pred_region
          %s1988 = ssub.s32 128, 128
          %1989 = vsyncadd %s1980, %s1988
          %s1990 = smul.addr %s38, 2
          %s1991 = sadd.s32 %s39, %s1990
          %s1992 = smul.addr %s1991, 128
          %s1993 = scalar_lea.hbm %s15, %s1992
          %s1995 = sshll.u32 %s1983, 4
          %s1996 = int_to_ptr.vmem [resolvable:$true] %s1995
          %1998 = dma.vmem_to_hbm [thread:$0]  %s1996, 128, %s1993, %s1980
        $region104: #{tpu_custom_call.1} parent=79 // pred_fallthru
          _
      $region80: #{tpu_custom_call.1} parent=5 // pred_fallthru
        _
      %p1999 = scmp.le.s32.totalorder 2, %s29
      // Predicated region
      $region105: #{tpu_custom_call.1} parent=5 // pred_check
        %p2000 = pneg %p1999
      $region106: #{tpu_custom_call.1} parent=5 // pred_check_branch
        %2002 = sbr.rel (%p2000) target = $region108
      $region107: #{tpu_custom_call.1} parent=5 // pred_region
        %s2003 = ssub.s32 %s29, 2
        // Predicated region
        $region109: #{tpu_custom_call.1} parent=107 // pred_check
          %p2004 = pneg %p409
        $region110: #{tpu_custom_call.1} parent=107 // pred_check_branch
          %2006 = sbr.rel (%p2004) target = $region112
        $region111: #{tpu_custom_call.1} parent=107 // pred_region
          %s2007 = sand.u32 %s394, 1
          %s2008 = scalar_lea.sflag [#allocation6], %s2007
          %s2009 = sand.u32 %s394, 1
          %s2010 = smul.addr %s2009, 8
          %s2011 = scalar_lea.vmem [#allocation12], %s2010
          %2012 = dma.done %s2008, 128
        $region112: #{tpu_custom_call.1} parent=107 // pred_fallthru
          _
      $region108: #{tpu_custom_call.1} parent=5 // pred_fallthru
        _
    $region6: #{tpu_custom_call.1} parent=1 // loop_footer
      %s33 = sadd.s32 1, %s29
    $region7: #{tpu_custom_call.1} parent=1 // loop_footer_branch
      %28 = sbr.rel target = $region3
    $region8: #{tpu_custom_call.1} parent=1 // loop_exit
      _
    %2013 = vsyncpa [#allocation5], 1
    %s2014 = scalar_lea.sflag [#allocation5], 1
    %2015 = vsyncpa %s2014, 1
    %2016 = vsyncpa [#allocation8], 1
    %2017 = vsyncpa [#allocation11], 1
    %2018 = vsyncpa [#allocation6], 1
    %s2019 = scalar_lea.sflag [#allocation6], 1
    %2020 = vsyncpa %s2019, 1

</llo_original>
